<compile_context>
chip_gen: v7x
topology: tpu7x:2x2x1
jax: 0.10.0
libtpu: 0.0.40
codegen_flags: <defaults>
</compile_context>

<pallas_src>
import functools

import jax
import jax.numpy as jnp
from jax.experimental import pallas as pl
from jax.experimental.pallas import tpu as pltpu


# ----------------------------------------------------------------------------
# Pass 1: fused Q/K/V projection (once per batch element / spatial tile).
# ----------------------------------------------------------------------------
def _project_qkv_kernel(x_ref, w_ref, b_ref, q_ref, kv_ref, *, cq_pad):
    """x_ref: (1, C, tp) f32; w_ref: (2*cq_pad + C, C) bf16; b_ref: (.., 1) f32.
    Writes q_ref (1, cq_pad, tp) bf16 and kv_ref (1, cq_pad + C, tp) bf16."""
    x = x_ref[0].astype(jnp.bfloat16)                                  # (C, tp)
    proj = jnp.dot(w_ref[...], x,
                   preferred_element_type=jnp.float32) + b_ref[...]    # (ctot, tp)
    q_ref[0] = proj[:cq_pad].astype(jnp.bfloat16)
    kv_ref[0] = proj[cq_pad:].astype(jnp.bfloat16)


# ----------------------------------------------------------------------------
# Pass 2: flash attention over precomputed bf16 Q and fused K/V.
# ----------------------------------------------------------------------------
def _flash_attn_kernel(q_ref, kv_ref, x_ref, gamma_ref, o_ref,
                       m_sc, l_sc, acc_sc, *, cq_pad):
    """One (batch, query-tile, kv-tile) grid step, channel-first layout.

    q_ref  : (1, cq_pad, tq) bf16      projected queries (resident across ki)
    kv_ref : (1, cq_pad + C, tk) bf16  projected keys (rows [:cq_pad]) + values
    x_ref  : (1, C, tq) f32            residual input tile (resident across ki)
    gamma_ref : (1, 1) f32 in SMEM
    scratch: m_sc/l_sc (1, tq) f32, acc_sc (C, tq) f32
    """
    ki = pl.program_id(2)
    nk = pl.num_programs(2)

    @pl.when(ki == 0)
    def _init():
        m_sc[...] = jnp.full(m_sc.shape, -jnp.inf, dtype=jnp.float32)
        l_sc[...] = jnp.zeros(l_sc.shape, jnp.float32)
        acc_sc[...] = jnp.zeros(acc_sc.shape, jnp.float32)

    kv = kv_ref[0]                                   # (cq_pad + C, tk) bf16
    k_cn = kv[:cq_pad]                               # (cq_pad, tk)
    v_cn = kv[cq_pad:]                               # (C, tk)

    # Scores in transposed layout: s_t[j, i] = k_j . q_i  -> (tk, tq), f32 acc.
    s_t = jax.lax.dot_general(k_cn, q_ref[0],
                              (((0,), (0,)), ((), ())),
                              preferred_element_type=jnp.float32)

    # Online softmax along the kv axis (sublanes); statistics stay in f32.
    m_prev = m_sc[...]                                               # (1, tq)
    m_new = jnp.maximum(m_prev, jnp.max(s_t, axis=0, keepdims=True))
    alpha = jnp.exp(m_prev - m_new)                                  # (1, tq)
    p_t = jnp.exp(s_t - m_new)                                       # (tk, tq)
    l_sc[...] = alpha * l_sc[...] + jnp.sum(p_t, axis=0, keepdims=True)
    acc_sc[...] = alpha * acc_sc[...] + jnp.dot(
        v_cn, p_t.astype(jnp.bfloat16),
        preferred_element_type=jnp.float32)                          # (C, tq)
    m_sc[...] = m_new

    @pl.when(ki == nk - 1)
    def _finalize():
        # Exact reciprocal: runs once per query tile, negligible cost, better
        # parity with the f32 reference than the EUP approximation.
        inv_l = pl.reciprocal(l_sc[...], approx=False)               # (1, tq)
        out_cn = acc_sc[...] * inv_l                                 # (C, tq)
        gamma = gamma_ref[0, 0]
        o_ref[0] = (gamma * out_cn + x_ref[0]).astype(o_ref.dtype)


# ----------------------------------------------------------------------------
# Host-side wrappers.
# ----------------------------------------------------------------------------
def fuse_qkv_weights(wq, bq, wk, bk, wv, bv):
    """Fuse Conv2d(1x1) weights into one padded (2*cq_pad + C, C) bf16 matrix.

    Row layout: [Q (cq_pad rows, zero-padded) | K (cq_pad rows) | V (C rows)].
    Call once at model init (hoisted out of the per-forward path)."""
    cq, c = wq.shape
    cq_pad = ((cq + 15) // 16) * 16          # bf16 sublane-tile boundary
    ctot = 2 * cq_pad + c
    w_all = (jnp.zeros((ctot, c), jnp.float32)
             .at[:cq].set(wq)
             .at[cq_pad:cq_pad + cq].set(wk)
             .at[2 * cq_pad:].set(wv)
             .astype(jnp.bfloat16))
    b_all = (jnp.zeros((ctot, 1), jnp.float32)
             .at[:cq, 0].set(bq)
             .at[cq_pad:cq_pad + cq, 0].set(bk)
             .at[2 * cq_pad:, 0].set(bv))
    return w_all, b_all


def _pick_tile(n, pref):
    """Largest tile <= pref that divides n, preferring multiples of 128."""
    t = min(pref, n)
    while t > 128 and n % t != 0:
        t -= 128
    if n % t != 0:
        t = n
    return t


def self_attention_pallas(x_nchw, w_all, b_all, gamma2d, *, tq=512, tk=512, tp=512):
    """x_nchw: (B, C, H, W) f32.  w_all/b_all from fuse_qkv_weights.
    gamma2d: (1, 1) f32.  Returns (B, C, H, W) f32."""
    B, C, H, W = x_nchw.shape
    N = H * W
    ctot = w_all.shape[0]
    cq_pad = (ctot - C) // 2
    ckv = cq_pad + C

    tp = _pick_tile(N, tp)
    tq = _pick_tile(N, tq)
    tk = _pick_tile(N, tk)

    # NCHW -> (B, C, N) is a pure reshape (no transpose, no extra HBM traffic).
    x_cn = x_nchw.reshape(B, C, N)

    vmem_cap = 48 * 1024 * 1024   # safe on v7x's 64 MiB/TC, plenty for <=512 tiles

    # ---- Pass 1: fused projection, bf16 Q and K/V written once per batch ----
    q_proj, kv_proj = pl.pallas_call(
        functools.partial(_project_qkv_kernel, cq_pad=cq_pad),
        out_shape=(jax.ShapeDtypeStruct((B, cq_pad, N), jnp.bfloat16),
                   jax.ShapeDtypeStruct((B, ckv, N), jnp.bfloat16)),
        grid_spec=pltpu.PrefetchScalarGridSpec(
            num_scalar_prefetch=0,
            grid=(B, N // tp),
            in_specs=[
                pl.BlockSpec((1, C, tp), lambda b, ni: (b, 0, ni)),     # x tile
                pl.BlockSpec((ctot, C), lambda b, ni: (0, 0)),          # fused W
                pl.BlockSpec((ctot, 1), lambda b, ni: (0, 0)),          # fused b
            ],
            out_specs=[
                pl.BlockSpec((1, cq_pad, tp), lambda b, ni: (b, 0, ni)),
                pl.BlockSpec((1, ckv, tp), lambda b, ni: (b, 0, ni)),
            ],
        ),
        compiler_params=pltpu.CompilerParams(
            dimension_semantics=("parallel", "parallel"),
            vmem_limit_bytes=vmem_cap,
        ),
    )(x_cn, w_all, b_all)

    # ---- Pass 2: flash attention + gamma-scaled residual ----
    out_cn = pl.pallas_call(
        functools.partial(_flash_attn_kernel, cq_pad=cq_pad),
        out_shape=jax.ShapeDtypeStruct((B, C, N), jnp.float32),
        grid_spec=pltpu.PrefetchScalarGridSpec(
            num_scalar_prefetch=0,
            grid=(B, N // tq, N // tk),
            in_specs=[
                pl.BlockSpec((1, cq_pad, tq), lambda b, qi, ki: (b, 0, qi)),  # Q tile
                pl.BlockSpec((1, ckv, tk), lambda b, qi, ki: (b, 0, ki)),     # K/V tile
                pl.BlockSpec((1, C, tq), lambda b, qi, ki: (b, 0, qi)),       # residual x
                pl.BlockSpec(memory_space=pltpu.MemorySpace.SMEM),            # gamma
            ],
            out_specs=pl.BlockSpec((1, C, tq), lambda b, qi, ki: (b, 0, qi)),
            scratch_shapes=[
                pltpu.VMEM((1, tq), jnp.float32),    # running max
                pltpu.VMEM((1, tq), jnp.float32),    # running sum
                pltpu.VMEM((C, tq), jnp.float32),    # output accumulator
            ],
        ),
        compiler_params=pltpu.CompilerParams(
            dimension_semantics=("parallel", "parallel", "arbitrary"),
            vmem_limit_bytes=vmem_cap,
        ),
    )(q_proj, kv_proj, x_cn, gamma2d)

    return out_cn.reshape(B, C, H, W)


# ----------------------------------------------------------------------------
# Pure-JAX reference + deterministic init (for verification).
# ----------------------------------------------------------------------------
def _reference_forward(x_nchw, wq, bq, wk, bk, wv, bv, gamma):
    B, C, H, W = x_nchw.shape
    N = H * W
    x_cn = x_nchw.reshape(B, C, N)                                   # (B, C, N)
    q = jnp.einsum('oc,bcn->bon', wq, x_cn) + bq[None, :, None]      # (B, Cq, N)
    k = jnp.einsum('oc,bcn->bon', wk, x_cn) + bk[None, :, None]      # (B, Cq, N)
    v = jnp.einsum('oc,bcn->bon', wv, x_cn) + bv[None, :, None]      # (B, C, N)
    attn = jax.nn.softmax(jnp.einsum('bci,bcj->bij', q, k), axis=-1)
    out = jnp.einsum('bij,bcj->bci', attn, v)                        # (B, C, N)
    out = gamma * out + x_cn
    return out.reshape(B, C, H, W)


def _init_params(key, in_channels):
    """Matches SelfAttention.__init__ parameter shapes: Conv2d 1x1 weights as
    (out, in), biases (out,), gamma = torch.zeros(1)."""
    cq = in_channels // 8
    ks = jax.random.split(key, 6)
    bound = 1.0 / jnp.sqrt(in_channels)
    wq = jax.random.uniform(ks[0], (cq, in_channels), jnp.float32, -bound, bound)
    bq = jax.random.uniform(ks[1], (cq,), jnp.float32, -bound, bound)
    wk = jax.random.uniform(ks[2], (cq, in_channels), jnp.float32, -bound, bound)
    bk = jax.random.uniform(ks[3], (cq,), jnp.float32, -bound, bound)
    wv = jax.random.uniform(ks[4], (in_channels, in_channels), jnp.float32, -bound, bound)
    bv = jax.random.uniform(ks[5], (in_channels,), jnp.float32, -bound, bound)
    gamma = jnp.zeros((1,), jnp.float32)
    return wq, bq, wk, bk, wv, bv, gamma


if __name__ == "__main__":
    key = jax.random.PRNGKey(0)
    B, C, H, W = 2, 32, 16, 16          # N = 256
    k_x, k_p = jax.random.split(key)
    x = jax.random.normal(k_x, (B, C, H, W), jnp.float32)
    wq, bq, wk, bk, wv, bv, gamma = _init_params(k_p, C)

    # Weight fusion / padding hoisted out of the per-forward path.
    w_all, b_all = fuse_qkv_weights(wq, bq, wk, bk, wv, bv)

    fwd = jax.jit(self_attention_pallas)

    # 1) faithful init (gamma == 0): output must equal x; still exercises the
    #    full projection + flash-attention path.
    g0 = jnp.reshape(gamma, (1, 1)).astype(jnp.float32)
    out0 = jax.block_until_ready(fwd(x, w_all, b_all, g0))
    ref0 = _reference_forward(x, wq, bq, wk, bk, wv, bv, gamma)
    assert jnp.allclose(out0, ref0, atol=1e-5, rtol=1e-5), "gamma=0 residual path mismatch"

    # 2) non-zero gamma so the attention branch contributes.  Tolerance loosened
    #    vs. the f32 reference because Q/K/V/P use bf16 MXU operands (softmax
    #    statistics remain f32).
    gamma_nz = jnp.full((1,), 0.5, jnp.float32)
    g1 = jnp.reshape(gamma_nz, (1, 1)).astype(jnp.float32)
    out1 = jax.block_until_ready(fwd(x, w_all, b_all, g1))
    ref1 = _reference_forward(x, wq, bq, wk, bk, wv, bv, gamma_nz)
    assert jnp.allclose(out1, ref1, atol=5e-2, rtol=5e-2), "gamma=0.5 attention mismatch"

    print("KERNEL_OK")
</pallas_src>

<mosaic_0001>
module attributes {stable_mosaic.version = 11 : i64} {
  func.func @_project_qkv_kernel(%arg0: i32, %arg1: i32, %arg2: memref<1x32x256xf32, #tpu.memory_space<vmem>>, %arg3: memref<64x32xbf16, #tpu.memory_space<vmem>>, %arg4: memref<64x1xf32, #tpu.memory_space<vmem>>, %arg5: memref<1x16x256xbf16, #tpu.memory_space<vmem>>, %arg6: memref<1x48x256xbf16, #tpu.memory_space<vmem>>) attributes {dimension_semantics = [#tpu.dimension_semantics<parallel>, #tpu.dimension_semantics<parallel>], iteration_bounds = array<i64: 2, 1>, scalar_prefetch = 0 : i64, scratch_operands = 0 : i64, tpu.core_type = #tpu.core_type<tc>, window_params = [{transform_indices = @transform_0, window_bounds = array<i64: 1, 32, 256>}, {pipeline_mode = #tpu.pipeline_mode<synchronous>, transform_indices = @transform_1, window_bounds = array<i64: 64, 32>}, {pipeline_mode = #tpu.pipeline_mode<synchronous>, transform_indices = @transform_2, window_bounds = array<i64: 64, 1>}, {transform_indices = @transform_3, window_bounds = array<i64: 1, 16, 256>}, {transform_indices = @transform_4, window_bounds = array<i64: 1, 48, 256>}]} {
    %c0 = arith.constant 0 : index
    %c0_0 = arith.constant 0 : index
    %c0_1 = arith.constant 0 : index
    %0 = vector.load %arg2[%c0, %c0_0, %c0_1] : memref<1x32x256xf32, #tpu.memory_space<vmem>>, vector<1x32x256xf32>
    %1 = vector.shape_cast %0 : vector<1x32x256xf32> to vector<32x256xf32>
    %2 = arith.truncf %1 : vector<32x256xf32> to vector<32x256xbf16>
    %c0_2 = arith.constant 0 : index
    %c0_3 = arith.constant 0 : index
    %3 = vector.load %arg3[%c0_2, %c0_3] : memref<64x32xbf16, #tpu.memory_space<vmem>>, vector<64x32xbf16>
    %cst = arith.constant dense<0.000000e+00> : vector<64x256xf32>
    %4 = tpu.matmul %3, %2, %cst {dimension_numbers = #tpu.dot_dimension_numbers<[1], [0], [0], [1], [0, 0, 1, 1], [], []>} : vector<64x32xbf16>, vector<32x256xbf16>, vector<64x256xf32> -> vector<64x256xf32>
    %c0_4 = arith.constant 0 : index
    %c0_5 = arith.constant 0 : index
    %5 = vector.load %arg4[%c0_4, %c0_5] : memref<64x1xf32, #tpu.memory_space<vmem>>, vector<64x1xf32>
    %6 = vector.broadcast %5 : vector<64x1xf32> to vector<64x256xf32>
    %7 = arith.addf %4, %6 : vector<64x256xf32>
    %8 = vector.extract_strided_slice %7 {offsets = [0, 0], sizes = [16, 256], strides = [1, 1]} : vector<64x256xf32> to vector<16x256xf32>
    %9 = arith.truncf %8 : vector<16x256xf32> to vector<16x256xbf16>
    %c0_6 = arith.constant 0 : index
    %c0_7 = arith.constant 0 : index
    %c0_8 = arith.constant 0 : index
    %10 = vector.load %arg5[%c0_6, %c0_7, %c0_8] : memref<1x16x256xbf16, #tpu.memory_space<vmem>>, vector<1x16x256xbf16>
    %11 = vector.shape_cast %10 : vector<1x16x256xbf16> to vector<16x256xbf16>
    %12 = vector.shape_cast %9 : vector<16x256xbf16> to vector<1x16x256xbf16>
    tpu.vector_store %arg5[%c0_6, %c0_7, %c0_8], %12 {strides = array<i32>} : memref<1x16x256xbf16, #tpu.memory_space<vmem>>, vector<1x16x256xbf16>,
    %13 = vector.extract_strided_slice %7 {offsets = [16, 0], sizes = [48, 256], strides = [1, 1]} : vector<64x256xf32> to vector<48x256xf32>
    %14 = arith.truncf %13 : vector<48x256xf32> to vector<48x256xbf16>
    %c0_9 = arith.constant 0 : index
    %c0_10 = arith.constant 0 : index
    %c0_11 = arith.constant 0 : index
    %15 = vector.load %arg6[%c0_9, %c0_10, %c0_11] : memref<1x48x256xbf16, #tpu.memory_space<vmem>>, vector<1x48x256xbf16>
    %16 = vector.shape_cast %15 : vector<1x48x256xbf16> to vector<48x256xbf16>
    %17 = vector.shape_cast %14 : vector<48x256xbf16> to vector<1x48x256xbf16>
    tpu.vector_store %arg6[%c0_9, %c0_10, %c0_11], %17 {strides = array<i32>} : memref<1x48x256xbf16, #tpu.memory_space<vmem>>, vector<1x48x256xbf16>,
    return
  }
  func.func @transform_0(%arg0: i32, %arg1: i32) -> (i32, i32, i32) {
    %c0_i32 = arith.constant 0 : i32
    %c0_i32_0 = arith.constant 0 : i32
    return %arg0, %c0_i32, %arg1 : i32, i32, i32
  }
  func.func @transform_1(%arg0: i32, %arg1: i32) -> (i32, i32) {
    %c0_i32 = arith.constant 0 : i32
    %c0_i32_0 = arith.constant 0 : i32
    %c0_i32_1 = arith.constant 0 : i32
    return %c0_i32, %c0_i32_0 : i32, i32
  }
  func.func @transform_2(%arg0: i32, %arg1: i32) -> (i32, i32) {
    %c0_i32 = arith.constant 0 : i32
    %c0_i32_0 = arith.constant 0 : i32
    %c0_i32_1 = arith.constant 0 : i32
    return %c0_i32, %c0_i32_0 : i32, i32
  }
  func.func @transform_3(%arg0: i32, %arg1: i32) -> (i32, i32, i32) {
    %c0_i32 = arith.constant 0 : i32
    %c0_i32_0 = arith.constant 0 : i32
    return %arg0, %c0_i32, %arg1 : i32, i32, i32
  }
  func.func @transform_4(%arg0: i32, %arg1: i32) -> (i32, i32, i32) {
    %c0_i32 = arith.constant 0 : i32
    %c0_i32_0 = arith.constant 0 : i32
    return %arg0, %c0_i32, %arg1 : i32, i32, i32
  }
}

module attributes {stable_mosaic.version = 11 : i64} {
  func.func @_flash_attn_kernel(%arg0: i32, %arg1: i32, %arg2: i32, %arg3: memref<1x16x256xbf16, #tpu.memory_space<vmem>>, %arg4: memref<1x48x256xbf16, #tpu.memory_space<vmem>>, %arg5: memref<1x32x256xf32, #tpu.memory_space<vmem>>, %arg6: memref<1x1xf32, #tpu.memory_space<smem>>, %arg7: memref<1x32x256xf32, #tpu.memory_space<vmem>>, %arg8: memref<1x256xf32, #tpu.memory_space<vmem>>, %arg9: memref<1x256xf32, #tpu.memory_space<vmem>>, %arg10: memref<32x256xf32, #tpu.memory_space<vmem>>) attributes {dimension_semantics = [#tpu.dimension_semantics<parallel>, #tpu.dimension_semantics<parallel>, #tpu.dimension_semantics<arbitrary>], iteration_bounds = array<i64: 2, 1, 1>, scalar_prefetch = 0 : i64, scratch_operands = 3 : i64, tpu.core_type = #tpu.core_type<tc>, window_params = [{transform_indices = @transform_0, window_bounds = array<i64: 1, 16, 256>}, {transform_indices = @transform_1, window_bounds = array<i64: 1, 48, 256>}, {transform_indices = @transform_2, window_bounds = array<i64: 1, 32, 256>}, {transform_indices = @transform_3, window_bounds = array<i64: 1, 1>}, {transform_indices = @transform_4, window_bounds = array<i64: 1, 32, 256>}]} {
    %c0_i32 = arith.constant 0 : i32
    %0 = arith.cmpi eq, %arg2, %c0_i32 : i32
    %1 = arith.extui %0 : i1 to i32
    %c0_i32_0 = arith.constant 0 : i32
    %2 = arith.cmpi ne, %1, %c0_i32_0 : i32
    scf.if %2 {
      %cst_23 = arith.constant 0xFF800000 : f32
      %36 = vector.broadcast %cst_23 : f32 to vector<1x256xf32>
      %c0_24 = arith.constant 0 : index
      %c0_25 = arith.constant 0 : index
      %37 = vector.load %arg8[%c0_24, %c0_25] : memref<1x256xf32, #tpu.memory_space<vmem>>, vector<1x256xf32>
      tpu.vector_store %arg8[%c0_24, %c0_25], %36 {strides = array<i32>} : memref<1x256xf32, #tpu.memory_space<vmem>>, vector<1x256xf32>,
      %cst_26 = arith.constant 0.000000e+00 : f32
      %38 = vector.broadcast %cst_26 : f32 to vector<1x256xf32>
      %c0_27 = arith.constant 0 : index
      %c0_28 = arith.constant 0 : index
      %39 = vector.load %arg9[%c0_27, %c0_28] : memref<1x256xf32, #tpu.memory_space<vmem>>, vector<1x256xf32>
      tpu.vector_store %arg9[%c0_27, %c0_28], %38 {strides = array<i32>} : memref<1x256xf32, #tpu.memory_space<vmem>>, vector<1x256xf32>,
      %cst_29 = arith.constant 0.000000e+00 : f32
      %40 = vector.broadcast %cst_29 : f32 to vector<32x256xf32>
      %c0_30 = arith.constant 0 : index
      %c0_31 = arith.constant 0 : index
      %41 = vector.load %arg10[%c0_30, %c0_31] : memref<32x256xf32, #tpu.memory_space<vmem>>, vector<32x256xf32>
      tpu.vector_store %arg10[%c0_30, %c0_31], %40 {strides = array<i32>} : memref<32x256xf32, #tpu.memory_space<vmem>>, vector<32x256xf32>,
    } else {
    }
    %c0 = arith.constant 0 : index
    %c0_1 = arith.constant 0 : index
    %c0_2 = arith.constant 0 : index
    %3 = vector.load %arg4[%c0, %c0_1, %c0_2] : memref<1x48x256xbf16, #tpu.memory_space<vmem>>, vector<1x48x256xbf16>
    %4 = vector.shape_cast %3 : vector<1x48x256xbf16> to vector<48x256xbf16>
    %5 = vector.extract_strided_slice %4 {offsets = [0, 0], sizes = [16, 256], strides = [1, 1]} : vector<48x256xbf16> to vector<16x256xbf16>
    %6 = vector.extract_strided_slice %4 {offsets = [16, 0], sizes = [32, 256], strides = [1, 1]} : vector<48x256xbf16> to vector<32x256xbf16>
    %c0_3 = arith.constant 0 : index
    %c0_4 = arith.constant 0 : index
    %c0_5 = arith.constant 0 : index
    %7 = vector.load %arg3[%c0_3, %c0_4, %c0_5] : memref<1x16x256xbf16, #tpu.memory_space<vmem>>, vector<1x16x256xbf16>
    %8 = vector.shape_cast %7 : vector<1x16x256xbf16> to vector<16x256xbf16>
    %cst = arith.constant dense<0.000000e+00> : vector<256x256xf32>
    %9 = tpu.matmul %5, %8, %cst {dimension_numbers = #tpu.dot_dimension_numbers<[0], [0], [1], [1], [0, 1, 1, 1], [], []>} : vector<16x256xbf16>, vector<16x256xbf16>, vector<256x256xf32> -> vector<256x256xf32>
    %c0_6 = arith.constant 0 : index
    %c0_7 = arith.constant 0 : index
    %10 = vector.load %arg8[%c0_6, %c0_7] : memref<1x256xf32, #tpu.memory_space<vmem>>, vector<1x256xf32>
    %cst_8 = arith.constant dense<0xFF800000> : vector<256xf32>
    %11 = vector.multi_reduction <maximumf>, %9, %cst_8 [0] : vector<256x256xf32> to vector<256xf32>
    %12 = vector.shape_cast %11 : vector<256xf32> to vector<1x256xf32>
    %13 = arith.maximumf %10, %12 : vector<1x256xf32>
    %14 = arith.subf %10, %13 : vector<1x256xf32>
    %15 = math.exp %14 : vector<1x256xf32>
    %16 = vector.broadcast %13 : vector<1x256xf32> to vector<256x256xf32>
    %17 = arith.subf %9, %16 : vector<256x256xf32>
    %18 = math.exp %17 : vector<256x256xf32>
    %c0_9 = arith.constant 0 : index
    %c0_10 = arith.constant 0 : index
    %19 = vector.load %arg9[%c0_9, %c0_10] : memref<1x256xf32, #tpu.memory_space<vmem>>, vector<1x256xf32>
    %20 = arith.mulf %15, %19 : vector<1x256xf32>
    %cst_11 = arith.constant dense<0.000000e+00> : vector<256xf32>
    %21 = vector.multi_reduction <add>, %18, %cst_11 [0] : vector<256x256xf32> to vector<256xf32>
    %22 = vector.shape_cast %21 : vector<256xf32> to vector<1x256xf32>
    %23 = arith.addf %20, %22 : vector<1x256xf32>
    %c0_12 = arith.constant 0 : index
    %c0_13 = arith.constant 0 : index
    %24 = vector.load %arg9[%c0_12, %c0_13] : memref<1x256xf32, #tpu.memory_space<vmem>>, vector<1x256xf32>
    tpu.vector_store %arg9[%c0_12, %c0_13], %23 {strides = array<i32>} : memref<1x256xf32, #tpu.memory_space<vmem>>, vector<1x256xf32>,
    %c0_14 = arith.constant 0 : index
    %c0_15 = arith.constant 0 : index
    %25 = vector.load %arg10[%c0_14, %c0_15] : memref<32x256xf32, #tpu.memory_space<vmem>>, vector<32x256xf32>
    %26 = vector.broadcast %15 : vector<1x256xf32> to vector<32x256xf32>
    %27 = arith.mulf %26, %25 : vector<32x256xf32>
    %28 = arith.truncf %18 : vector<256x256xf32> to vector<256x256xbf16>
    %cst_16 = arith.constant dense<0.000000e+00> : vector<32x256xf32>
    %29 = tpu.matmul %6, %28, %cst_16 {dimension_numbers = #tpu.dot_dimension_numbers<[1], [0], [0], [1], [0, 0, 1, 1], [], []>} : vector<32x256xbf16>, vector<256x256xbf16>, vector<32x256xf32> -> vector<32x256xf32>
    %30 = arith.addf %27, %29 : vector<32x256xf32>
    %c0_17 = arith.constant 0 : index
    %c0_18 = arith.constant 0 : index
    %31 = vector.load %arg10[%c0_17, %c0_18] : memref<32x256xf32, #tpu.memory_space<vmem>>, vector<32x256xf32>
    tpu.vector_store %arg10[%c0_17, %c0_18], %30 {strides = array<i32>} : memref<32x256xf32, #tpu.memory_space<vmem>>, vector<32x256xf32>,
    %c0_19 = arith.constant 0 : index
    %c0_20 = arith.constant 0 : index
    %32 = vector.load %arg8[%c0_19, %c0_20] : memref<1x256xf32, #tpu.memory_space<vmem>>, vector<1x256xf32>
    tpu.vector_store %arg8[%c0_19, %c0_20], %13 {strides = array<i32>} : memref<1x256xf32, #tpu.memory_space<vmem>>, vector<1x256xf32>,
    %c0_i32_21 = arith.constant 0 : i32
    %33 = arith.cmpi eq, %arg2, %c0_i32_21 : i32
    %34 = arith.extui %33 : i1 to i32
    %c0_i32_22 = arith.constant 0 : i32
    %35 = arith.cmpi ne, %34, %c0_i32_22 : i32
    scf.if %35 {
      %c0_23 = arith.constant 0 : index
      %c0_24 = arith.constant 0 : index
      %36 = vector.load %arg9[%c0_23, %c0_24] : memref<1x256xf32, #tpu.memory_space<vmem>>, vector<1x256xf32>
      %37 = tpu.reciprocal %36 : vector<1x256xf32> -> vector<1x256xf32>
      %c0_25 = arith.constant 0 : index
      %c0_26 = arith.constant 0 : index
      %38 = vector.load %arg10[%c0_25, %c0_26] : memref<32x256xf32, #tpu.memory_space<vmem>>, vector<32x256xf32>
      %39 = vector.broadcast %37 : vector<1x256xf32> to vector<32x256xf32>
      %40 = arith.mulf %38, %39 : vector<32x256xf32>
      %c0_27 = arith.constant 0 : index
      %c0_28 = arith.constant 0 : index
      %41 = memref.load %arg6[%c0_27, %c0_28] : memref<1x1xf32, #tpu.memory_space<smem>>
      %42 = vector.broadcast %41 : f32 to vector<32x256xf32>
      %43 = arith.mulf %42, %40 : vector<32x256xf32>
      %c0_29 = arith.constant 0 : index
      %c0_30 = arith.constant 0 : index
      %c0_31 = arith.constant 0 : index
      %44 = vector.load %arg5[%c0_29, %c0_30, %c0_31] : memref<1x32x256xf32, #tpu.memory_space<vmem>>, vector<1x32x256xf32>
      %45 = vector.shape_cast %44 : vector<1x32x256xf32> to vector<32x256xf32>
      %46 = arith.addf %43, %45 : vector<32x256xf32>
      %c0_32 = arith.constant 0 : index
      %c0_33 = arith.constant 0 : index
      %c0_34 = arith.constant 0 : index
      %47 = vector.load %arg7[%c0_32, %c0_33, %c0_34] : memref<1x32x256xf32, #tpu.memory_space<vmem>>, vector<1x32x256xf32>
      %48 = vector.shape_cast %47 : vector<1x32x256xf32> to vector<32x256xf32>
      %49 = vector.shape_cast %46 : vector<32x256xf32> to vector<1x32x256xf32>
      tpu.vector_store %arg7[%c0_32, %c0_33, %c0_34], %49 {strides = array<i32>} : memref<1x32x256xf32, #tpu.memory_space<vmem>>, vector<1x32x256xf32>,
    } else {
    }
    return
  }
  func.func @transform_0(%arg0: i32, %arg1: i32, %arg2: i32) -> (i32, i32, i32) {
    %c0_i32 = arith.constant 0 : i32
    %c0_i32_0 = arith.constant 0 : i32
    return %arg0, %c0_i32, %arg1 : i32, i32, i32
  }
  func.func @transform_1(%arg0: i32, %arg1: i32, %arg2: i32) -> (i32, i32, i32) {
    %c0_i32 = arith.constant 0 : i32
    %c0_i32_0 = arith.constant 0 : i32
    return %arg0, %c0_i32, %arg2 : i32, i32, i32
  }
  func.func @transform_2(%arg0: i32, %arg1: i32, %arg2: i32) -> (i32, i32, i32) {
    %c0_i32 = arith.constant 0 : i32
    %c0_i32_0 = arith.constant 0 : i32
    return %arg0, %c0_i32, %arg1 : i32, i32, i32
  }
  func.func @transform_3(%arg0: i32, %arg1: i32, %arg2: i32) -> (i32, i32) {
    %c0_i32 = arith.constant 0 : i32
    %c0_i32_0 = arith.constant 0 : i32
    %c0_i32_1 = arith.constant 0 : i32
    return %c0_i32, %c0_i32_0 : i32, i32
  }
  func.func @transform_4(%arg0: i32, %arg1: i32, %arg2: i32) -> (i32, i32, i32) {
    %c0_i32 = arith.constant 0 : i32
    %c0_i32_0 = arith.constant 0 : i32
    return %arg0, %c0_i32, %arg1 : i32, i32, i32
  }
}

</mosaic_0001>

<llo_original>
// kernel: self_attention_pallas.2
$region0: #{self_attention_pallas.2}
  #allocation0 [shape = 'u32[]', space=smem, size = 0x4, offset = 0x4, fixed_abs, tag = 'smem constant byte address 0x4 - core index']
  #allocation1 [shape = 'u32[144,128]{1,0:T(1,128)}', space=vmem, size = 0x12000, scoped, tag = 'internal scratch']
  %s0 = inlined_call_operand.vmem [shape: f32[2,32,256], index: 0, kind: input, shape index: {}]
  %s1 = inlined_call_operand.vmem [shape: bf16[64,32], index: 1, kind: input, shape index: {}]
  %s2 = inlined_call_operand.vmem [shape: f32[64,1], index: 2, kind: input, shape index: {}]
  %s3 = inlined_call_operand.vmem [shape: bf16[2,16,256], index: 3, kind: output, shape index: {0}]
  %s4 = inlined_call_operand.vmem [shape: bf16[2,48,256], index: 4, kind: output, shape index: {1}]
  %5 = xla_tuple %s3, %s4
  %s6 = sld [smem:[#allocation0]]
  $region53: #{self_attention_pallas.2} parent=0
    _
  %s8 = ssub.s32 1, %s6
  %s9 = scalar_select 0, %s8, %s6
  loop: start=0, step=1, limit=4
  $region2: #{self_attention_pallas.2} parent=0 // loop_pre_header
    _
  $region3: #{self_attention_pallas.2} parent=0 // loop_header
    %s11 = sphi 0, %s15
    %p12 = scmp.ge.s32.totalorder %s11, 4
    %s18 = sphi 0, %s30
    %s19 = sphi 0, %s26
    %s20 = sphi 0, %s18
    %s21 = sphi 0, %s19
    %s22 = sphi 0, %s20
    %s23 = sphi 0, %s21
    %s35 = sphi 0, %s37
    %s38 = sphi 0, %s35
    %s39 = sphi 0, %s38
    %s55 = sphi 0, %s39
    %s59 = sphi 0, %s59
    %s61 = sphi 0, %s59
    %s62 = sphi 0, %s61
    %s76 = sphi 0, %s62
    %s80 = sphi 0, %s80
    %s82 = sphi 0, %s80
    %s83 = sphi 0, %s82
    %s97 = sphi 0, %s83
    %s105 = sphi 0, %s107
    %s108 = sphi 0, %s105
    %s109 = sphi 0, %s108
    %s125 = sphi 0, %s109
    %s133 = sphi 0, %s135
    %s136 = sphi 0, %s133
    %s137 = sphi 0, %s136
    %s153 = sphi 0, %s137
  $region4: #{self_attention_pallas.2} parent=0 // loop_header_branch
    %14 = sbr.rel (%p12) target = $region8
  $region5: #{self_attention_pallas.2} parent=0 // loop_body
    %s16 = ssub.s32 %s11, 1
    %s17 = ssub.s32 %s11, 2
    %s24 = sadd.s32 1, %s19
    %p25 = scmp.ge.s32.totalorder %s24, 1
    %s26 = scalar_select %p25, 0, %s24
    %s27 = sadd.s32 1, %s18
    %s28 = scalar_select %p25, %s27, %s18
    %p29 = scmp.ge.s32.totalorder %s28, 2
    %s30 = scalar_select %p29, 0, %s28
    %s31 = ssub.s32 %s18, %s30
    %s32 = ssub.s32 %s19, %s26
    %s33 = sor.u32 %s31, %s32
    %p34 = scmp.eq.s32.totalorder %s33, 0
    %s36 = sadd.s32 %s35, 1
    %s37 = scalar_select %p34, %s35, %s36
    %p40 = pneg %p34
    %p41 = scmp.eq.s32.totalorder %s11, 1
    %p42 = por %p40, %p41
    %p43 = scmp.ne.s32.totalorder %s35, %s38
    %p44 = scmp.eq.s32.totalorder %s11, 0
    %p45 = por %p43, %p44
    %p46 = scmp.ne.s32.totalorder %s35, %s38
    %p47 = scmp.eq.s32.totalorder %s16, 1
    %p48 = por %p46, %p47
    %p49 = scmp.ne.s32.totalorder %s38, %s39
    %p50 = scmp.eq.s32.totalorder %s16, 0
    %p51 = por %p49, %p50
    %p52 = scmp.ne.s32.totalorder %s38, %s39
    %p53 = scmp.eq.s32.totalorder %s17, 1
    %p54 = por %p52, %p53
    %p56 = scmp.ne.s32.totalorder %s39, %s55
    %p57 = scmp.eq.s32.totalorder %s17, 0
    %p58 = por %p56, %p57
    %s60 = sadd.s32 %s59, 1
    %p63 = scmp.eq.s32.totalorder %s11, 1
    %p64 = scmp.ne.s32.totalorder %s59, %s61
    %p65 = scmp.eq.s32.totalorder %s11, 0
    %p66 = por %p64, %p65
    %p67 = scmp.ne.s32.totalorder %s59, %s61
    %p68 = scmp.eq.s32.totalorder %s16, 1
    %p69 = por %p67, %p68
    %p70 = scmp.ne.s32.totalorder %s61, %s62
    %p71 = scmp.eq.s32.totalorder %s16, 0
    %p72 = por %p70, %p71
    %p73 = scmp.ne.s32.totalorder %s61, %s62
    %p74 = scmp.eq.s32.totalorder %s17, 1
    %p75 = por %p73, %p74
    %p77 = scmp.ne.s32.totalorder %s62, %s76
    %p78 = scmp.eq.s32.totalorder %s17, 0
    %p79 = por %p77, %p78
    %s81 = sadd.s32 %s80, 1
    %p84 = scmp.eq.s32.totalorder %s11, 1
    %p85 = scmp.ne.s32.totalorder %s80, %s82
    %p86 = scmp.eq.s32.totalorder %s11, 0
    %p87 = por %p85, %p86
    %p88 = scmp.ne.s32.totalorder %s80, %s82
    %p89 = scmp.eq.s32.totalorder %s16, 1
    %p90 = por %p88, %p89
    %p91 = scmp.ne.s32.totalorder %s82, %s83
    %p92 = scmp.eq.s32.totalorder %s16, 0
    %p93 = por %p91, %p92
    %p94 = scmp.ne.s32.totalorder %s82, %s83
    %p95 = scmp.eq.s32.totalorder %s17, 1
    %p96 = por %p94, %p95
    %p98 = scmp.ne.s32.totalorder %s83, %s97
    %p99 = scmp.eq.s32.totalorder %s17, 0
    %p100 = por %p98, %p99
    %s101 = ssub.s32 %s18, %s30
    %s102 = ssub.s32 %s19, %s26
    %s103 = sor.u32 %s101, %s102
    %p104 = scmp.eq.s32.totalorder %s103, 0
    %s106 = sadd.s32 %s105, 1
    %s107 = scalar_select %p104, %s105, %s106
    %p110 = pneg %p104
    %p111 = scmp.eq.s32.totalorder %s11, 1
    %p112 = por %p110, %p111
    %p113 = scmp.ne.s32.totalorder %s105, %s108
    %p114 = scmp.eq.s32.totalorder %s11, 0
    %p115 = por %p113, %p114
    %p116 = scmp.ne.s32.totalorder %s105, %s108
    %p117 = scmp.eq.s32.totalorder %s16, 1
    %p118 = por %p116, %p117
    %p119 = scmp.ne.s32.totalorder %s108, %s109
    %p120 = scmp.eq.s32.totalorder %s16, 0
    %p121 = por %p119, %p120
    %p122 = scmp.ne.s32.totalorder %s108, %s109
    %p123 = scmp.eq.s32.totalorder %s17, 1
    %p124 = por %p122, %p123
    %p126 = scmp.ne.s32.totalorder %s109, %s125
    %p127 = scmp.eq.s32.totalorder %s17, 0
    %p128 = por %p126, %p127
    %s129 = ssub.s32 %s18, %s30
    %s130 = ssub.s32 %s19, %s26
    %s131 = sor.u32 %s129, %s130
    %p132 = scmp.eq.s32.totalorder %s131, 0
    %s134 = sadd.s32 %s133, 1
    %s135 = scalar_select %p132, %s133, %s134
    %p138 = pneg %p132
    %p139 = scmp.eq.s32.totalorder %s11, 1
    %p140 = por %p138, %p139
    %p141 = scmp.ne.s32.totalorder %s133, %s136
    %p142 = scmp.eq.s32.totalorder %s11, 0
    %p143 = por %p141, %p142
    %p144 = scmp.ne.s32.totalorder %s133, %s136
    %p145 = scmp.eq.s32.totalorder %s16, 1
    %p146 = por %p144, %p145
    %p147 = scmp.ne.s32.totalorder %s136, %s137
    %p148 = scmp.eq.s32.totalorder %s16, 0
    %p149 = por %p147, %p148
    %p150 = scmp.ne.s32.totalorder %s136, %s137
    %p151 = scmp.eq.s32.totalorder %s17, 1
    %p152 = por %p150, %p151
    %p154 = scmp.ne.s32.totalorder %s137, %s153
    %p155 = scmp.eq.s32.totalorder %s17, 0
    %p156 = por %p154, %p155
    %p157 = scmp.le.s32.totalorder 1, %s11
    %p158 = scmp.lt.s32.totalorder %s11, 3
    %p159 = pnand %p157, %p158
    %p160 = pneg %p159
    // Predicated region
    $region9: #{self_attention_pallas.2} parent=5 // pred_check
      _
    $region10: #{self_attention_pallas.2} parent=5 // pred_check_branch
      %162 = sbr.rel (%p159) target = $region12
    $region11: #{self_attention_pallas.2} parent=5 // pred_region
      %s163 = ssub.s32 %s11, 1
      // Predicated region
      $region13: #{self_attention_pallas.2} parent=11 // pred_check
        %p164 = pneg %p72
      $region14: #{self_attention_pallas.2} parent=11 // pred_check_branch
        %166 = sbr.rel (%p164) target = $region16
      $region15: #{self_attention_pallas.2} parent=11 // pred_region
        _
      $region16: #{self_attention_pallas.2} parent=11 // pred_fallthru
        _
      // Predicated region
      $region17: #{self_attention_pallas.2} parent=11 // pred_check
        %p167 = pneg %p93
      $region18: #{self_attention_pallas.2} parent=11 // pred_check_branch
        %169 = sbr.rel (%p167) target = $region20
      $region19: #{self_attention_pallas.2} parent=11 // pred_region
        _
      $region20: #{self_attention_pallas.2} parent=11 // pred_fallthru
        _
    $region12: #{self_attention_pallas.2} parent=5 // pred_fallthru
      _
    %p170 = scmp.lt.s32.totalorder %s11, 2
    // Predicated region
    $region21: #{self_attention_pallas.2} parent=5 // pred_check
      %p171 = pneg %p170
    $region22: #{self_attention_pallas.2} parent=5 // pred_check_branch
      %173 = sbr.rel (%p171) target = $region24
    $region23: #{self_attention_pallas.2} parent=5 // pred_region
      // Predicated region
      $region25: #{self_attention_pallas.2} parent=23 // pred_check
        %p174 = pneg %p45
      $region26: #{self_attention_pallas.2} parent=23 // pred_check_branch
        %176 = sbr.rel (%p174) target = $region28
      $region27: #{self_attention_pallas.2} parent=23 // pred_region
        %s177 = smul.u32 2, %s19
        %p178 = scmp.lt.s32.totalorder %s18, 1
        %s179 = scalar_select %p178, %s18, 1
        %p180 = scmp.lt.s32.totalorder %s177, 1
        %s181 = scalar_select %p180, %s177, 1
        %s182 = smul.addr %s179, 8
        %s183 = sadd.s32 %s181, %s182
        %s184 = smul.addr %s183, 8
        %s185 = scalar_lea.vmem %s0, %s184
        %s186 = smul.u32 2, %s19
      $region28: #{self_attention_pallas.2} parent=23 // pred_fallthru
        _
    $region24: #{self_attention_pallas.2} parent=5 // pred_fallthru
      _
    %p187 = scmp.le.s32.totalorder 1, %s11
    %p188 = scmp.lt.s32.totalorder %s11, 3
    %p189 = pnand %p187, %p188
    %p190 = pneg %p189
    // Predicated region
    $region29: #{self_attention_pallas.2} parent=5 // pred_check
      _
    $region30: #{self_attention_pallas.2} parent=5 // pred_check_branch
      %192 = sbr.rel (%p189) target = $region32
    $region31: #{self_attention_pallas.2} parent=5 // pred_region
      %s193 = ssub.s32 %s11, 1
      %s194 = smul.u32 2, %s21
      %p195 = scmp.lt.s32.totalorder %s20, 1
      %s196 = scalar_select %p195, %s20, 1
      %p197 = scmp.lt.s32.totalorder %s194, 1
      %s198 = scalar_select %p197, %s194, 1
      %s199 = smul.addr %s196, 8
      %s200 = sadd.s32 %s198, %s199
      %s201 = smul.addr %s200, 8
      %s202 = scalar_lea.vmem %s0, %s201
      %p203 = pneg %p51
      %p204 = pneg %p48
      %p205 = pneg %p72
      %p206 = pneg %p69
      %p207 = pneg %p93
      %p208 = pneg %p90
      %p209 = pneg %p121
      %p210 = pneg %p118
      %s211 = smul.u32 2, %s21
      %p212 = scmp.lt.s32.totalorder %s20, 1
      %s213 = scalar_select %p212, %s20, 1
      %p214 = scmp.lt.s32.totalorder %s211, 1
      %s215 = scalar_select %p214, %s211, 1
      %s216 = smul.addr %s213, 4
      %s217 = sadd.s32 %s215, %s216
      %s218 = smul.addr %s217, 4
      %s219 = scalar_lea.vmem %s3, %s218
      %p220 = pneg %p149
      %p221 = pneg %p146
      %s222 = smul.u32 2, %s21
      %p223 = scmp.lt.s32.totalorder %s20, 1
      %s224 = scalar_select %p223, %s20, 1
      %p225 = scmp.lt.s32.totalorder %s222, 1
      %s226 = scalar_select %p225, %s222, 1
      %s227 = smul.addr %s224, 12
      %s228 = sadd.s32 %s226, %s227
      %s229 = smul.addr %s228, 4
      %s230 = scalar_lea.vmem %s4, %s229
      %s231 = smul.u32 2, %s21
      %p232 = scmp.lt.s32.totalorder %s20, 1
      %s233 = scalar_select %p232, %s20, 1
      %p234 = scmp.lt.s32.totalorder %s231, 1
      %s235 = scalar_select %p234, %s231, 1
      %s236 = smul.addr %s233, 8
      %s237 = sadd.s32 %s235, %s236
      %s238 = smul.addr %s237, 8
      %s239 = scalar_lea.vmem %s0, %s238
      %s240 = smul.u32 2, %s21
      %s241 = smul.u32 2, %s21
      %p242 = scmp.lt.s32.totalorder %s20, 1
      %s243 = scalar_select %p242, %s20, 1
      %p244 = scmp.lt.s32.totalorder %s241, 1
      %s245 = scalar_select %p244, %s241, 1
      %s246 = smul.addr %s243, 4
      %s247 = sadd.s32 %s245, %s246
      %s248 = smul.addr %s247, 4
      %s249 = scalar_lea.vmem %s3, %s248
      %s250 = smul.u32 2, %s21
      %s251 = smul.u32 2, %s21
      %p252 = scmp.lt.s32.totalorder %s20, 1
      %s253 = scalar_select %p252, %s20, 1
      %p254 = scmp.lt.s32.totalorder %s251, 1
      %s255 = scalar_select %p254, %s251, 1
      %s256 = smul.addr %s253, 12
      %s257 = sadd.s32 %s255, %s256
      %s258 = smul.addr %s257, 4
      %s259 = scalar_lea.vmem %s4, %s258
      %s260 = smul.u32 2, %s21
      %v262 = vld [vmem:[%s239] sm:$0xff]
      %v263 = vld [vmem:[%s239 + $0x8] sm:$0xff]
      %v264 = vld [vmem:[%s239 + $0x10] sm:$0xff]
      %v265 = vld [vmem:[%s239 + $0x18] sm:$0xff]
      %v266 = vld [vmem:[%s239 + $0x20] sm:$0xff]
      %v267 = vld [vmem:[%s239 + $0x28] sm:$0xff]
      %v268 = vld [vmem:[%s239 + $0x30] sm:$0xff]
      %v269 = vld [vmem:[%s239 + $0x38] sm:$0xff]
      %v270 = vpack.c.bf16 %v264, %v262
      %v271 = vpack.c.bf16 %v265, %v263
      %v272 = vpack.c.bf16 %v268, %v266
      %v273 = vpack.c.bf16 %v269, %v267
      %v274 = vld [vmem:[%s1] sm:$0xf]
      %v275 = vld [vmem:[%s1 + $0x4] sm:$0xf]
      %v276 = vld [vmem:[%s1 + $0x8] sm:$0xf]
      %v277 = vld [vmem:[%s1 + $0xc] sm:$0xf]
      %v278 = vld [vmem:[%s1 + $0x10] sm:$0xf]
      %v279 = vld [vmem:[%s1 + $0x14] sm:$0xf]
      %v280 = vld [vmem:[%s1 + $0x18] sm:$0xf]
      %v281 = vld [vmem:[%s1 + $0x1c] sm:$0xf]
      %v282 = vld [vmem:[%s2] sm:$0xff]
      %v283 = vld [vmem:[%s2 + $0x8] sm:$0xff]
      %v284 = vld [vmem:[%s2 + $0x10] sm:$0xff]
      %v285 = vld [vmem:[%s2 + $0x18] sm:$0xff]
      %v286 = vld [vmem:[%s2 + $0x20] sm:$0xff]
      %v287 = vld [vmem:[%s2 + $0x28] sm:$0xff]
      %v288 = vld [vmem:[%s2 + $0x30] sm:$0xff]
      %v289 = vld [vmem:[%s2 + $0x38] sm:$0xff]
      %291 = vset.pattern.permute.xlu0 0
      %292 = vperm.xlu0 %291, %v282
      %v293 = vpop.permute.xlu0 %292
      %296 = vset.pattern.permute.xlu0 0
      %297 = vperm.xlu0 %296, %v283
      %v298 = vpop.permute.xlu0 %297
      %301 = vset.pattern.permute.xlu0 0
      %302 = vperm.xlu0 %301, %v284
      %v303 = vpop.permute.xlu0 %302
      %306 = vset.pattern.permute.xlu0 0
      %307 = vperm.xlu0 %306, %v285
      %v308 = vpop.permute.xlu0 %307
      %311 = vset.pattern.permute.xlu0 0
      %312 = vperm.xlu0 %311, %v286
      %v313 = vpop.permute.xlu0 %312
      %316 = vset.pattern.permute.xlu0 0
      %317 = vperm.xlu0 %316, %v287
      %v318 = vpop.permute.xlu0 %317
      %321 = vset.pattern.permute.xlu0 0
      %322 = vperm.xlu0 %321, %v288
      %v323 = vpop.permute.xlu0 %322
      %326 = vset.pattern.permute.xlu0 0
      %327 = vperm.xlu0 %326, %v289
      %v328 = vpop.permute.xlu0 %327
      %v338 = vunpack.c.l.b16 %v274
      %v339 = vunpack.c.l.b16 %v275
      %v340 = vunpack.c.l.b16 %v276
      %v341 = vunpack.c.l.b16 %v277
      %v342 = vunpack.c.l.b16 %v278
      %v343 = vunpack.c.l.b16 %v279
      %v344 = vunpack.c.l.b16 %v280
      %v345 = vunpack.c.l.b16 %v281
      %v346 = vpack.c.b16 %v339, %v338
      %v347 = vpack.c.b16 %v341, %v340
      %v348 = vpack.c.b16 %v343, %v342
      %v349 = vpack.c.b16 %v345, %v344
      %vm350 = vcmask 261120
      %v352 = vsel %vm350, %v346, 0
      %v355 = vsel %vm350, %v347, 0
      %v358 = vsel %vm350, %v348, 0
      %v361 = vsel %vm350, %v349, 0
      %363 = vmatprep.subr.bf16.mxu0 %v271
      %364 = vmatpush1.bf16.msra.mxu0 %v270
      %365 = vmatprep.subr.bf16.mxu0 %v273
      %366 = vmatpush1.bf16.msra.mxu0 %v272
      %367 = vmatprep.subr.bf16.mxu0 0
      %368 = vmatpush1.bf16.msra.mxu0 0
      %369 = vmatprep.subr.bf16.mxu0 0
      %370 = vmatpush1.bf16.msra.mxu0 0
      %371 = vmatprep.subr.bf16.mxu0 0
      %372 = vmatpush1.bf16.msra.mxu0 0
      %373 = vmatprep.subr.bf16.mxu0 0
      %374 = vmatpush1.bf16.msra.mxu0 0
      %375 = vmatprep.subr.bf16.mxu0 0
      %376 = vmatpush1.bf16.msra.mxu0 0
      %377 = vmatprep.subr.bf16.mxu0 0
      %378 = vmatpush1.bf16.msra.mxu0 0
      %379 = vmatprep.subr.bf16.mxu0 0
      %380 = vmatpush1.bf16.msra.mxu0 0
      %381 = vmatprep.subr.bf16.mxu0 0
      %382 = vmatpush1.bf16.msra.mxu0 0
      %383 = vmatprep.subr.bf16.mxu0 0
      %384 = vmatpush1.bf16.msra.mxu0 0
      %385 = vmatprep.subr.bf16.mxu0 0
      %386 = vmatpush1.bf16.msra.mxu0 0
      %387 = vmatprep.subr.bf16.mxu0 0
      %388 = vmatpush1.bf16.msra.mxu0 0
      %389 = vmatprep.subr.bf16.mxu0 0
      %390 = vmatpush1.bf16.msra.mxu0 0
      %391 = vmatprep.subr.bf16.mxu0 0
      %392 = vmatpush1.bf16.msra.mxu0 0
      %393 = vmatprep.subr.bf16.mxu0 0
      %394 = vmatpush1.bf16.msra.mxu0 0
      %395 = vmatprep.mubr.bf16.mxu0 0
      %396 = vmatmul.mubr.bf16.gmra.mrb[0].mxu0 %v352
      %v397 = vpop.f32.mrb[0].mxu0
      %v398 = vadd.f32 %v293, %v397
      %v399 = vpop.f32.mrb[0].mxu0
      %v400 = vadd.f32 %v293, %v399
      %v401 = vpop.f32.mrb[0].mxu0
      %v402 = vadd.f32 %v298, %v401
      %v403 = vpop.f32.mrb[0].mxu0
      %v404 = vadd.f32 %v298, %v403
      %405 = vmatprep.mubr.bf16.mxu0 0
      %406 = vmatmul.mubr.bf16.gmra.mrb[0].mxu0 %v355
      %v407 = vpop.f32.mrb[0].mxu0
      %v408 = vadd.f32 %v303, %v407
      %v409 = vpop.f32.mrb[0].mxu0
      %v410 = vadd.f32 %v303, %v409
      %v411 = vpop.f32.mrb[0].mxu0
      %v412 = vadd.f32 %v308, %v411
      %v413 = vpop.f32.mrb[0].mxu0
      %v414 = vadd.f32 %v308, %v413
      %415 = vmatprep.mubr.bf16.mxu0 0
      %416 = vmatmul.mubr.bf16.gmra.mrb[0].mxu0 %v358
      %v417 = vpop.f32.mrb[0].mxu0
      %v418 = vadd.f32 %v313, %v417
      %v419 = vpop.f32.mrb[0].mxu0
      %v420 = vadd.f32 %v313, %v419
      %v421 = vpop.f32.mrb[0].mxu0
      %v422 = vadd.f32 %v318, %v421
      %v423 = vpop.f32.mrb[0].mxu0
      %v424 = vadd.f32 %v318, %v423
      %425 = vmatprep.mubr.bf16.mxu0 0
      %426 = vmatmul.mubr.bf16.gmra.mrb[0].mxu0 %v361
      %v427 = vpop.f32.mrb[0].mxu0
      %v428 = vadd.f32 %v323, %v427
      %v429 = vpop.f32.mrb[0].mxu0
      %v430 = vadd.f32 %v323, %v429
      %v431 = vpop.f32.mrb[0].mxu0
      %v432 = vadd.f32 %v328, %v431
      %v433 = vpop.f32.mrb[0].mxu0
      %v434 = vadd.f32 %v328, %v433
      %435 = vdwg.mxu0
      %v436 = vpack.c.bf16 %v402, %v398
      %v437 = vpack.c.bf16 %v404, %v400
      %v440 = vunpack.c.l.b16 %v436
      %v441 = vunpack.c.l.b16 %v437
      %v442 = vunpack.c.h.b16 %v436
      %v443 = vunpack.c.h.b16 %v437
      %v444 = vpack.c.b16 %v441, %v440
      %v445 = vpack.c.b16 %v443, %v442
      %448 = vst [vmem:[%s249] sm:$0xff] %v444
      %449 = vst [vmem:[%s249 + $0x8] sm:$0xff] %v445
      %v450 = vpack.c.bf16 %v412, %v408
      %v451 = vpack.c.bf16 %v414, %v410
      %v452 = vpack.c.bf16 %v422, %v418
      %v453 = vpack.c.bf16 %v424, %v420
      %v454 = vpack.c.bf16 %v432, %v428
      %v455 = vpack.c.bf16 %v434, %v430
      %v462 = vunpack.c.l.b16 %v450
      %v463 = vunpack.c.l.b16 %v451
      %v464 = vunpack.c.h.b16 %v450
      %v465 = vunpack.c.h.b16 %v451
      %v466 = vunpack.c.l.b16 %v452
      %v467 = vunpack.c.l.b16 %v453
      %v468 = vunpack.c.h.b16 %v452
      %v469 = vunpack.c.h.b16 %v453
      %v470 = vunpack.c.l.b16 %v454
      %v471 = vunpack.c.l.b16 %v455
      %v472 = vunpack.c.h.b16 %v454
      %v473 = vunpack.c.h.b16 %v455
      %v474 = vpack.c.b16 %v463, %v462
      %v475 = vpack.c.b16 %v465, %v464
      %v476 = vpack.c.b16 %v467, %v466
      %v477 = vpack.c.b16 %v469, %v468
      %v478 = vpack.c.b16 %v471, %v470
      %v479 = vpack.c.b16 %v473, %v472
      %486 = vst [vmem:[%s259] sm:$0xff] %v474
      %487 = vst [vmem:[%s259 + $0x8] sm:$0xff] %v475
      %488 = vst [vmem:[%s259 + $0x10] sm:$0xff] %v476
      %489 = vst [vmem:[%s259 + $0x18] sm:$0xff] %v477
      %490 = vst [vmem:[%s259 + $0x20] sm:$0xff] %v478
      %491 = vst [vmem:[%s259 + $0x28] sm:$0xff] %v479
      %s492 = smul.u32 2, %s21
      %p493 = scmp.lt.s32.totalorder %s20, 1
      %s494 = scalar_select %p493, %s20, 1
      %p495 = scmp.lt.s32.totalorder %s492, 1
      %s496 = scalar_select %p495, %s492, 1
      %s497 = smul.addr %s494, 4
      %s498 = sadd.s32 %s496, %s497
      %s499 = smul.addr %s498, 4
      %s500 = scalar_lea.vmem %s3, %s499
      %s501 = smul.u32 2, %s21
      %p502 = scmp.lt.s32.totalorder %s20, 1
      %s503 = scalar_select %p502, %s20, 1
      %p504 = scmp.lt.s32.totalorder %s501, 1
      %s505 = scalar_select %p504, %s501, 1
      %s506 = smul.addr %s503, 12
      %s507 = sadd.s32 %s505, %s506
      %s508 = smul.addr %s507, 4
      %s509 = scalar_lea.vmem %s4, %s508
      // Predicated region
      $region33: #{self_attention_pallas.2} parent=31 // pred_check
        %p510 = pneg %p118
      $region34: #{self_attention_pallas.2} parent=31 // pred_check_branch
        %512 = sbr.rel (%p510) target = $region36
      $region35: #{self_attention_pallas.2} parent=31 // pred_region
        %s513 = smul.u32 2, %s21
      $region36: #{self_attention_pallas.2} parent=31 // pred_fallthru
        _
      // Predicated region
      $region37: #{self_attention_pallas.2} parent=31 // pred_check
        %p514 = pneg %p146
      $region38: #{self_attention_pallas.2} parent=31 // pred_check_branch
        %516 = sbr.rel (%p514) target = $region40
      $region39: #{self_attention_pallas.2} parent=31 // pred_region
        %s517 = smul.u32 2, %s21
      $region40: #{self_attention_pallas.2} parent=31 // pred_fallthru
        _
    $region32: #{self_attention_pallas.2} parent=5 // pred_fallthru
      _
    %p518 = scmp.le.s32.totalorder 2, %s11
    // Predicated region
    $region41: #{self_attention_pallas.2} parent=5 // pred_check
      %p519 = pneg %p518
    $region42: #{self_attention_pallas.2} parent=5 // pred_check_branch
      %521 = sbr.rel (%p519) target = $region44
    $region43: #{self_attention_pallas.2} parent=5 // pred_region
      %s522 = ssub.s32 %s11, 2
      // Predicated region
      $region45: #{self_attention_pallas.2} parent=43 // pred_check
        %p523 = pneg %p124
      $region46: #{self_attention_pallas.2} parent=43 // pred_check_branch
        %525 = sbr.rel (%p523) target = $region48
      $region47: #{self_attention_pallas.2} parent=43 // pred_region
        %s526 = smul.u32 2, %s23
        %p527 = scmp.lt.s32.totalorder %s22, 1
        %s528 = scalar_select %p527, %s22, 1
        %p529 = scmp.lt.s32.totalorder %s526, 1
        %s530 = scalar_select %p529, %s526, 1
        %s531 = smul.addr %s528, 4
        %s532 = sadd.s32 %s530, %s531
        %s533 = smul.addr %s532, 4
        %s534 = scalar_lea.vmem %s3, %s533
      $region48: #{self_attention_pallas.2} parent=43 // pred_fallthru
        _
      // Predicated region
      $region49: #{self_attention_pallas.2} parent=43 // pred_check
        %p535 = pneg %p152
      $region50: #{self_attention_pallas.2} parent=43 // pred_check_branch
        %537 = sbr.rel (%p535) target = $region52
      $region51: #{self_attention_pallas.2} parent=43 // pred_region
        %s538 = smul.u32 2, %s23
        %p539 = scmp.lt.s32.totalorder %s22, 1
        %s540 = scalar_select %p539, %s22, 1
        %p541 = scmp.lt.s32.totalorder %s538, 1
        %s542 = scalar_select %p541, %s538, 1
        %s543 = smul.addr %s540, 12
        %s544 = sadd.s32 %s542, %s543
        %s545 = smul.addr %s544, 4
        %s546 = scalar_lea.vmem %s4, %s545
      $region52: #{self_attention_pallas.2} parent=43 // pred_fallthru
        _
    $region44: #{self_attention_pallas.2} parent=5 // pred_fallthru
      _
  $region6: #{self_attention_pallas.2} parent=0 // loop_footer
    %s15 = sadd.s32 1, %s11
  $region7: #{self_attention_pallas.2} parent=0 // loop_footer_branch
    %10 = sbr.rel target = $region3
  $region8: #{self_attention_pallas.2} parent=0 // loop_exit
    _

// kernel: self_attention_pallas.3
$region0: #{self_attention_pallas.3}
  #allocation0 [shape = 'u32[]', space=smem, size = 0x4, offset = 0x4, fixed_abs, tag = 'smem constant byte address 0x4 - core index']
  #allocation1 [shape = 'u32[144,128]{1,0:T(1,128)}', space=vmem, size = 0x12000, scoped, tag = 'internal scratch']
  #allocation2 [shape = 'f32[1,256]{1,0:T(1,128)}', space=vmem, size = 0x400, scoped, tag = 'scratch operand']
  #allocation3 [shape = 'f32[1,256]{1,0:T(1,128)}', space=vmem, size = 0x400, scoped, tag = 'scratch operand']
  #allocation4 [shape = 'f32[32,256]{1,0:T(8,128)}', space=vmem, size = 0x8000, scoped, tag = 'scratch operand']
  #allocation5 [shape = 'f32[1,1]{1,0:T(1,128)S(6)}', space=smem, size = 0x200, scoped, tag = 'scoped memory for self_attention_pallas.3']
  %s0 = inlined_call_operand.vmem [shape: bf16[2,16,256], index: 0, kind: input, shape index: {}]
  %s1 = inlined_call_operand.vmem [shape: bf16[2,48,256], index: 1, kind: input, shape index: {}]
  %s2 = inlined_call_operand.vmem [shape: f32[2,32,256], index: 2, kind: input, shape index: {}]
  %s3 = inlined_call_operand.<no memory space> [shape: f32[1,1], index: 3, kind: input, shape index: {}]
  %s4 = inlined_call_operand.vmem [shape: f32[2,32,256], index: 4, kind: output, shape index: {}]
  %s5 = sld [smem:[#allocation0]]
  $region57: #{self_attention_pallas.3} parent=0
    _
  %s7 = ssub.s32 1, %s5
  %s8 = scalar_select 0, %s7, %s5
  %9 = sst [smem:[#allocation5]] %s3
  loop: start=0, step=1, limit=4
  $region2: #{self_attention_pallas.3} parent=0 // loop_pre_header
    _
  $region3: #{self_attention_pallas.3} parent=0 // loop_header
    %s11 = sphi 0, %s15
    %p12 = scmp.ge.s32.totalorder %s11, 4
    %s18 = sphi 0, %s37
    %s19 = sphi 0, %s33
    %s20 = sphi 0, %s29
    %s21 = sphi 0, %s18
    %s22 = sphi 0, %s19
    %s23 = sphi 0, %s20
    %s24 = sphi 0, %s21
    %s25 = sphi 0, %s22
    %s26 = sphi 0, %s23
    %s42 = sphi 0, %s44
    %s45 = sphi 0, %s42
    %s46 = sphi 0, %s45
    %s62 = sphi 0, %s46
    %s70 = sphi 0, %s72
    %s73 = sphi 0, %s70
    %s74 = sphi 0, %s73
    %s90 = sphi 0, %s74
    %s98 = sphi 0, %s100
    %s101 = sphi 0, %s98
    %s102 = sphi 0, %s101
    %s118 = sphi 0, %s102
    %s122 = sphi 0, %s122
    %s124 = sphi 0, %s122
    %s125 = sphi 0, %s124
    %s139 = sphi 0, %s125
    %s147 = sphi 0, %s149
    %s150 = sphi 0, %s147
    %s151 = sphi 0, %s150
    %s167 = sphi 0, %s151
  $region4: #{self_attention_pallas.3} parent=0 // loop_header_branch
    %14 = sbr.rel (%p12) target = $region8
  $region5: #{self_attention_pallas.3} parent=0 // loop_body
    %s16 = ssub.s32 %s11, 1
    %s17 = ssub.s32 %s11, 2
    %s27 = sadd.s32 1, %s20
    %p28 = scmp.ge.s32.totalorder %s27, 1
    %s29 = scalar_select %p28, 0, %s27
    %s30 = sadd.s32 1, %s19
    %s31 = scalar_select %p28, %s30, %s19
    %p32 = scmp.ge.s32.totalorder %s31, 1
    %s33 = scalar_select %p32, 0, %s31
    %s34 = sadd.s32 1, %s18
    %s35 = scalar_select %p32, %s34, %s18
    %p36 = scmp.ge.s32.totalorder %s35, 2
    %s37 = scalar_select %p36, 0, %s35
    %s38 = ssub.s32 %s18, %s37
    %s39 = ssub.s32 %s19, %s33
    %s40 = sor.u32 %s38, %s39
    %p41 = scmp.eq.s32.totalorder %s40, 0
    %s43 = sadd.s32 %s42, 1
    %s44 = scalar_select %p41, %s42, %s43
    %p47 = pneg %p41
    %p48 = scmp.eq.s32.totalorder %s11, 1
    %p49 = por %p47, %p48
    %p50 = scmp.ne.s32.totalorder %s42, %s45
    %p51 = scmp.eq.s32.totalorder %s11, 0
    %p52 = por %p50, %p51
    %p53 = scmp.ne.s32.totalorder %s42, %s45
    %p54 = scmp.eq.s32.totalorder %s16, 1
    %p55 = por %p53, %p54
    %p56 = scmp.ne.s32.totalorder %s45, %s46
    %p57 = scmp.eq.s32.totalorder %s16, 0
    %p58 = por %p56, %p57
    %p59 = scmp.ne.s32.totalorder %s45, %s46
    %p60 = scmp.eq.s32.totalorder %s17, 1
    %p61 = por %p59, %p60
    %p63 = scmp.ne.s32.totalorder %s46, %s62
    %p64 = scmp.eq.s32.totalorder %s17, 0
    %p65 = por %p63, %p64
    %s66 = ssub.s32 %s18, %s37
    %s67 = ssub.s32 %s20, %s29
    %s68 = sor.u32 %s66, %s67
    %p69 = scmp.eq.s32.totalorder %s68, 0
    %s71 = sadd.s32 %s70, 1
    %s72 = scalar_select %p69, %s70, %s71
    %p75 = pneg %p69
    %p76 = scmp.eq.s32.totalorder %s11, 1
    %p77 = por %p75, %p76
    %p78 = scmp.ne.s32.totalorder %s70, %s73
    %p79 = scmp.eq.s32.totalorder %s11, 0
    %p80 = por %p78, %p79
    %p81 = scmp.ne.s32.totalorder %s70, %s73
    %p82 = scmp.eq.s32.totalorder %s16, 1
    %p83 = por %p81, %p82
    %p84 = scmp.ne.s32.totalorder %s73, %s74
    %p85 = scmp.eq.s32.totalorder %s16, 0
    %p86 = por %p84, %p85
    %p87 = scmp.ne.s32.totalorder %s73, %s74
    %p88 = scmp.eq.s32.totalorder %s17, 1
    %p89 = por %p87, %p88
    %p91 = scmp.ne.s32.totalorder %s74, %s90
    %p92 = scmp.eq.s32.totalorder %s17, 0
    %p93 = por %p91, %p92
    %s94 = ssub.s32 %s18, %s37
    %s95 = ssub.s32 %s19, %s33
    %s96 = sor.u32 %s94, %s95
    %p97 = scmp.eq.s32.totalorder %s96, 0
    %s99 = sadd.s32 %s98, 1
    %s100 = scalar_select %p97, %s98, %s99
    %p103 = pneg %p97
    %p104 = scmp.eq.s32.totalorder %s11, 1
    %p105 = por %p103, %p104
    %p106 = scmp.ne.s32.totalorder %s98, %s101
    %p107 = scmp.eq.s32.totalorder %s11, 0
    %p108 = por %p106, %p107
    %p109 = scmp.ne.s32.totalorder %s98, %s101
    %p110 = scmp.eq.s32.totalorder %s16, 1
    %p111 = por %p109, %p110
    %p112 = scmp.ne.s32.totalorder %s101, %s102
    %p113 = scmp.eq.s32.totalorder %s16, 0
    %p114 = por %p112, %p113
    %p115 = scmp.ne.s32.totalorder %s101, %s102
    %p116 = scmp.eq.s32.totalorder %s17, 1
    %p117 = por %p115, %p116
    %p119 = scmp.ne.s32.totalorder %s102, %s118
    %p120 = scmp.eq.s32.totalorder %s17, 0
    %p121 = por %p119, %p120
    %s123 = sadd.s32 %s122, 1
    %p126 = scmp.eq.s32.totalorder %s11, 1
    %p127 = scmp.ne.s32.totalorder %s122, %s124
    %p128 = scmp.eq.s32.totalorder %s11, 0
    %p129 = por %p127, %p128
    %p130 = scmp.ne.s32.totalorder %s122, %s124
    %p131 = scmp.eq.s32.totalorder %s16, 1
    %p132 = por %p130, %p131
    %p133 = scmp.ne.s32.totalorder %s124, %s125
    %p134 = scmp.eq.s32.totalorder %s16, 0
    %p135 = por %p133, %p134
    %p136 = scmp.ne.s32.totalorder %s124, %s125
    %p137 = scmp.eq.s32.totalorder %s17, 1
    %p138 = por %p136, %p137
    %p140 = scmp.ne.s32.totalorder %s125, %s139
    %p141 = scmp.eq.s32.totalorder %s17, 0
    %p142 = por %p140, %p141
    %s143 = ssub.s32 %s18, %s37
    %s144 = ssub.s32 %s19, %s33
    %s145 = sor.u32 %s143, %s144
    %p146 = scmp.eq.s32.totalorder %s145, 0
    %s148 = sadd.s32 %s147, 1
    %s149 = scalar_select %p146, %s147, %s148
    %p152 = pneg %p146
    %p153 = scmp.eq.s32.totalorder %s11, 1
    %p154 = por %p152, %p153
    %p155 = scmp.ne.s32.totalorder %s147, %s150
    %p156 = scmp.eq.s32.totalorder %s11, 0
    %p157 = por %p155, %p156
    %p158 = scmp.ne.s32.totalorder %s147, %s150
    %p159 = scmp.eq.s32.totalorder %s16, 1
    %p160 = por %p158, %p159
    %p161 = scmp.ne.s32.totalorder %s150, %s151
    %p162 = scmp.eq.s32.totalorder %s16, 0
    %p163 = por %p161, %p162
    %p164 = scmp.ne.s32.totalorder %s150, %s151
    %p165 = scmp.eq.s32.totalorder %s17, 1
    %p166 = por %p164, %p165
    %p168 = scmp.ne.s32.totalorder %s151, %s167
    %p169 = scmp.eq.s32.totalorder %s17, 0
    %p170 = por %p168, %p169
    %p171 = scmp.le.s32.totalorder 1, %s11
    %p172 = scmp.lt.s32.totalorder %s11, 3
    %p173 = pnand %p171, %p172
    %p174 = pneg %p173
    // Predicated region
    $region9: #{self_attention_pallas.3} parent=5 // pred_check
      _
    $region10: #{self_attention_pallas.3} parent=5 // pred_check_branch
      %176 = sbr.rel (%p173) target = $region12
    $region11: #{self_attention_pallas.3} parent=5 // pred_region
      %s177 = ssub.s32 %s11, 1
      // Predicated region
      $region13: #{self_attention_pallas.3} parent=11 // pred_check
        %p178 = pneg %p135
      $region14: #{self_attention_pallas.3} parent=11 // pred_check_branch
        %180 = sbr.rel (%p178) target = $region16
      $region15: #{self_attention_pallas.3} parent=11 // pred_region
        _
      $region16: #{self_attention_pallas.3} parent=11 // pred_fallthru
        _
    $region12: #{self_attention_pallas.3} parent=5 // pred_fallthru
      _
    %p181 = scmp.lt.s32.totalorder %s11, 2
    // Predicated region
    $region17: #{self_attention_pallas.3} parent=5 // pred_check
      %p182 = pneg %p181
    $region18: #{self_attention_pallas.3} parent=5 // pred_check_branch
      %184 = sbr.rel (%p182) target = $region20
    $region19: #{self_attention_pallas.3} parent=5 // pred_region
      // Predicated region
      $region21: #{self_attention_pallas.3} parent=19 // pred_check
        %p185 = pneg %p52
      $region22: #{self_attention_pallas.3} parent=19 // pred_check_branch
        %187 = sbr.rel (%p185) target = $region24
      $region23: #{self_attention_pallas.3} parent=19 // pred_region
        %s188 = smul.u32 2, %s19
        %p189 = scmp.lt.s32.totalorder %s18, 1
        %s190 = scalar_select %p189, %s18, 1
        %p191 = scmp.lt.s32.totalorder %s188, 1
        %s192 = scalar_select %p191, %s188, 1
        %s193 = smul.addr %s190, 4
        %s194 = sadd.s32 %s192, %s193
        %s195 = smul.addr %s194, 4
        %s196 = scalar_lea.vmem %s0, %s195
        %s197 = smul.u32 2, %s19
      $region24: #{self_attention_pallas.3} parent=19 // pred_fallthru
        _
      // Predicated region
      $region25: #{self_attention_pallas.3} parent=19 // pred_check
        %p198 = pneg %p80
      $region26: #{self_attention_pallas.3} parent=19 // pred_check_branch
        %200 = sbr.rel (%p198) target = $region28
      $region27: #{self_attention_pallas.3} parent=19 // pred_region
        %s201 = smul.u32 2, %s20
        %p202 = scmp.lt.s32.totalorder %s18, 1
        %s203 = scalar_select %p202, %s18, 1
        %p204 = scmp.lt.s32.totalorder %s201, 1
        %s205 = scalar_select %p204, %s201, 1
        %s206 = smul.addr %s203, 12
        %s207 = sadd.s32 %s205, %s206
        %s208 = smul.addr %s207, 4
        %s209 = scalar_lea.vmem %s1, %s208
        %s210 = smul.u32 2, %s20
      $region28: #{self_attention_pallas.3} parent=19 // pred_fallthru
        _
      // Predicated region
      $region29: #{self_attention_pallas.3} parent=19 // pred_check
        %p211 = pneg %p108
      $region30: #{self_attention_pallas.3} parent=19 // pred_check_branch
        %213 = sbr.rel (%p211) target = $region32
      $region31: #{self_attention_pallas.3} parent=19 // pred_region
        %s214 = smul.u32 2, %s19
        %p215 = scmp.lt.s32.totalorder %s18, 1
        %s216 = scalar_select %p215, %s18, 1
        %p217 = scmp.lt.s32.totalorder %s214, 1
        %s218 = scalar_select %p217, %s214, 1
        %s219 = smul.addr %s216, 8
        %s220 = sadd.s32 %s218, %s219
        %s221 = smul.addr %s220, 8
        %s222 = scalar_lea.vmem %s2, %s221
        %s223 = smul.u32 2, %s19
      $region32: #{self_attention_pallas.3} parent=19 // pred_fallthru
        _
    $region20: #{self_attention_pallas.3} parent=5 // pred_fallthru
      _
    %p224 = scmp.le.s32.totalorder 1, %s11
    %p225 = scmp.lt.s32.totalorder %s11, 3
    %p226 = pnand %p224, %p225
    %p227 = pneg %p226
    // Predicated region
    $region33: #{self_attention_pallas.3} parent=5 // pred_check
      _
    $region34: #{self_attention_pallas.3} parent=5 // pred_check_branch
      %229 = sbr.rel (%p226) target = $region36
    $region35: #{self_attention_pallas.3} parent=5 // pred_region
      %s230 = ssub.s32 %s11, 1
      %s231 = smul.u32 2, %s22
      %p232 = scmp.lt.s32.totalorder %s21, 1
      %s233 = scalar_select %p232, %s21, 1
      %p234 = scmp.lt.s32.totalorder %s231, 1
      %s235 = scalar_select %p234, %s231, 1
      %s236 = smul.addr %s233, 4
      %s237 = sadd.s32 %s235, %s236
      %s238 = smul.addr %s237, 4
      %s239 = scalar_lea.vmem %s0, %s238
      %p240 = pneg %p58
      %p241 = pneg %p55
      %s242 = smul.u32 2, %s23
      %p243 = scmp.lt.s32.totalorder %s21, 1
      %s244 = scalar_select %p243, %s21, 1
      %p245 = scmp.lt.s32.totalorder %s242, 1
      %s246 = scalar_select %p245, %s242, 1
      %s247 = smul.addr %s244, 12
      %s248 = sadd.s32 %s246, %s247
      %s249 = smul.addr %s248, 4
      %s250 = scalar_lea.vmem %s1, %s249
      %p251 = pneg %p86
      %p252 = pneg %p83
      %s253 = smul.u32 2, %s22
      %p254 = scmp.lt.s32.totalorder %s21, 1
      %s255 = scalar_select %p254, %s21, 1
      %p256 = scmp.lt.s32.totalorder %s253, 1
      %s257 = scalar_select %p256, %s253, 1
      %s258 = smul.addr %s255, 8
      %s259 = sadd.s32 %s257, %s258
      %s260 = smul.addr %s259, 8
      %s261 = scalar_lea.vmem %s2, %s260
      %p262 = pneg %p114
      %p263 = pneg %p111
      %p264 = pneg %p135
      %p265 = pneg %p132
      %p266 = pneg %p163
      %p267 = pneg %p160
      %s268 = smul.u32 2, %s22
      %p269 = scmp.lt.s32.totalorder %s21, 1
      %s270 = scalar_select %p269, %s21, 1
      %p271 = scmp.lt.s32.totalorder %s268, 1
      %s272 = scalar_select %p271, %s268, 1
      %s273 = smul.addr %s270, 8
      %s274 = sadd.s32 %s272, %s273
      %s275 = smul.addr %s274, 8
      %s276 = scalar_lea.vmem %s4, %s275
      %s277 = smul.u32 2, %s22
      %p278 = scmp.lt.s32.totalorder %s21, 1
      %s279 = scalar_select %p278, %s21, 1
      %p280 = scmp.lt.s32.totalorder %s277, 1
      %s281 = scalar_select %p280, %s277, 1
      %s282 = smul.addr %s279, 4
      %s283 = sadd.s32 %s281, %s282
      %s284 = smul.addr %s283, 4
      %s285 = scalar_lea.vmem %s0, %s284
      %s286 = smul.u32 2, %s22
      %s287 = smul.u32 2, %s23
      %p288 = scmp.lt.s32.totalorder %s21, 1
      %s289 = scalar_select %p288, %s21, 1
      %p290 = scmp.lt.s32.totalorder %s287, 1
      %s291 = scalar_select %p290, %s287, 1
      %s292 = smul.addr %s289, 12
      %s293 = sadd.s32 %s291, %s292
      %s294 = smul.addr %s293, 4
      %s295 = scalar_lea.vmem %s1, %s294
      %s296 = smul.u32 2, %s23
      %s297 = smul.u32 2, %s22
      %p298 = scmp.lt.s32.totalorder %s21, 1
      %s299 = scalar_select %p298, %s21, 1
      %p300 = scmp.lt.s32.totalorder %s297, 1
      %s301 = scalar_select %p300, %s297, 1
      %s302 = smul.addr %s299, 8
      %s303 = sadd.s32 %s301, %s302
      %s304 = smul.addr %s303, 8
      %s305 = scalar_lea.vmem %s2, %s304
      %s306 = smul.u32 2, %s22
      %s307 = smul.u32 2, %s22
      %p308 = scmp.lt.s32.totalorder %s21, 1
      %s309 = scalar_select %p308, %s21, 1
      %p310 = scmp.lt.s32.totalorder %s307, 1
      %s311 = scalar_select %p310, %s307, 1
      %s312 = smul.addr %s309, 8
      %s313 = sadd.s32 %s311, %s312
      %s314 = smul.addr %s313, 8
      %s315 = scalar_lea.vmem %s4, %s314
      %s316 = smul.u32 2, %s22
      %p318 = scmp.eq.s32.totalorder %s23, 0
      // Predicated region
      $region37: #{self_attention_pallas.3} parent=35 // pred_check
        %p319 = pneg %p318
      $region38: #{self_attention_pallas.3} parent=35 // pred_check_branch
        %321 = sbr.rel (%p319) target = $region40
      $region39: #{self_attention_pallas.3} parent=35 // pred_region
        %v322 = vlaneseq
        %vm323 = vcmp.ge.s32.totalorder %v322, 0
        %vm324 = vcmp.lt.s32.totalorder %v322, 256
        %vm325 = vmand %vm323, %vm324
        %326 = vst.msk [vmem:[#allocation2] sm:$0x3] %vm325, -inf
        %327 = vst.msk [vmem:[#allocation3] sm:$0x3] %vm325, 0.0
        %328 = vst [vmem:[#allocation4] sm:$0xff] 0.0
        %329 = vst [vmem:[#allocation4 + $0x8] sm:$0xff] 0.0
        %330 = vst [vmem:[#allocation4 + $0x10] sm:$0xff] 0.0
        %331 = vst [vmem:[#allocation4 + $0x18] sm:$0xff] 0.0
        %332 = vst [vmem:[#allocation4 + $0x20] sm:$0xff] 0.0
        %333 = vst [vmem:[#allocation4 + $0x28] sm:$0xff] 0.0
        %334 = vst [vmem:[#allocation4 + $0x30] sm:$0xff] 0.0
        %335 = vst [vmem:[#allocation4 + $0x38] sm:$0xff] 0.0
      $region40: #{self_attention_pallas.3} parent=35 // pred_fallthru
        _
      %v336 = vld [vmem:[%s295] sm:$0xff]
      %v337 = vld [vmem:[%s295 + $0x8] sm:$0xff]
      %v338 = vld [vmem:[%s295 + $0x10] sm:$0xff]
      %v339 = vld [vmem:[%s295 + $0x18] sm:$0xff]
      %v340 = vld [vmem:[%s295 + $0x20] sm:$0xff]
      %v341 = vld [vmem:[%s295 + $0x28] sm:$0xff]
      %v342 = vld [vmem:[%s285] sm:$0xff]
      %v343 = vld [vmem:[%s285 + $0x8] sm:$0xff]
      %v346 = vunpack.c.l.b16 %v336
      %v347 = vunpack.c.h.b16 %v336
      %v348 = vunpack.c.l.b16 %v337
      %v349 = vunpack.c.h.b16 %v337
      %v350 = vpack.c.b16 %v348, %v346
      %v351 = vpack.c.b16 %v349, %v347
      %354 = vxpose.xlu0.c.b16.start [1/8] %v350, 128
      %355 = vxpose.xlu0.c.b16.cont [2/8] 0, 128
      %356 = vxpose.xlu0.c.b16.cont [3/8] 0, 128
      %357 = vxpose.xlu0.c.b16.cont [4/8] 0, 128
      %358 = vxpose.xlu0.c.b16.cont [5/8] 0, 128
      %359 = vxpose.xlu0.c.b16.cont [6/8] 0, 128
      %360 = vxpose.xlu0.c.b16.cont [7/8] 0, 128
      %361 = vxpose.xlu0.c.b16.end [8/8] 0, 128
      %v362 = vpop.trf.xlu0
      %v363 = vpop.trf.xlu0
      %v364 = vpop.trf.xlu0
      %v365 = vpop.trf.xlu0
      %v366 = vpop.trf.xlu0
      %v367 = vpop.trf.xlu0
      %v368 = vpop.trf.xlu0
      %v369 = vpop.trf.xlu0
      %370 = vxpose.xlu0.c.b16.start [1/8] %v351, 128
      %371 = vxpose.xlu0.c.b16.cont [2/8] 0, 128
      %372 = vxpose.xlu0.c.b16.cont [3/8] 0, 128
      %373 = vxpose.xlu0.c.b16.cont [4/8] 0, 128
      %374 = vxpose.xlu0.c.b16.cont [5/8] 0, 128
      %375 = vxpose.xlu0.c.b16.cont [6/8] 0, 128
      %376 = vxpose.xlu0.c.b16.cont [7/8] 0, 128
      %377 = vxpose.xlu0.c.b16.end [8/8] 0, 128
      %v378 = vpop.trf.xlu0
      %v379 = vpop.trf.xlu0
      %v380 = vpop.trf.xlu0
      %v381 = vpop.trf.xlu0
      %v382 = vpop.trf.xlu0
      %v383 = vpop.trf.xlu0
      %v384 = vpop.trf.xlu0
      %v385 = vpop.trf.xlu0
      %v388 = vunpack.c.l.b16 %v342
      %v389 = vunpack.c.h.b16 %v342
      %v390 = vunpack.c.l.b16 %v343
      %v391 = vunpack.c.h.b16 %v343
      %v392 = vpack.c.b16 %v390, %v388
      %v393 = vpack.c.b16 %v391, %v389
      %vm396 = vcmask 130048
      %v398 = vsel %vm396, %v362, 0
      %v401 = vsel %vm396, %v363, 0
      %v404 = vsel %vm396, %v364, 0
      %v407 = vsel %vm396, %v365, 0
      %v410 = vsel %vm396, %v366, 0
      %v413 = vsel %vm396, %v367, 0
      %v416 = vsel %vm396, %v368, 0
      %v419 = vsel %vm396, %v369, 0
      %v422 = vsel %vm396, %v378, 0
      %v425 = vsel %vm396, %v379, 0
      %v428 = vsel %vm396, %v380, 0
      %v431 = vsel %vm396, %v381, 0
      %v434 = vsel %vm396, %v382, 0
      %v437 = vsel %vm396, %v383, 0
      %v440 = vsel %vm396, %v384, 0
      %v443 = vsel %vm396, %v385, 0
      %445 = vmatprep.subr.bf16.mxu0 %v393
      %446 = vmatpush1.bf16.msra.mxu0 %v392
      %447 = vmatprep.subr.bf16.mxu0 0
      %448 = vmatpush1.bf16.msra.mxu0 0
      %449 = vmatprep.subr.bf16.mxu0 0
      %450 = vmatpush1.bf16.msra.mxu0 0
      %451 = vmatprep.subr.bf16.mxu0 0
      %452 = vmatpush1.bf16.msra.mxu0 0
      %453 = vmatprep.subr.bf16.mxu0 0
      %454 = vmatpush1.bf16.msra.mxu0 0
      %455 = vmatprep.subr.bf16.mxu0 0
      %456 = vmatpush1.bf16.msra.mxu0 0
      %457 = vmatprep.subr.bf16.mxu0 0
      %458 = vmatpush1.bf16.msra.mxu0 0
      %459 = vmatprep.subr.bf16.mxu0 0
      %460 = vmatpush1.bf16.msra.mxu0 0
      %461 = vmatprep.subr.bf16.mxu0 0
      %462 = vmatpush1.bf16.msra.mxu0 0
      %463 = vmatprep.subr.bf16.mxu0 0
      %464 = vmatpush1.bf16.msra.mxu0 0
      %465 = vmatprep.subr.bf16.mxu0 0
      %466 = vmatpush1.bf16.msra.mxu0 0
      %467 = vmatprep.subr.bf16.mxu0 0
      %468 = vmatpush1.bf16.msra.mxu0 0
      %469 = vmatprep.subr.bf16.mxu0 0
      %470 = vmatpush1.bf16.msra.mxu0 0
      %471 = vmatprep.subr.bf16.mxu0 0
      %472 = vmatpush1.bf16.msra.mxu0 0
      %473 = vmatprep.subr.bf16.mxu0 0
      %474 = vmatpush1.bf16.msra.mxu0 0
      %475 = vmatprep.subr.bf16.mxu0 0
      %476 = vmatpush1.bf16.msra.mxu0 0
      %477 = vmatprep.mubr.bf16.mxu0 0
      %478 = vmatmul.mubr.bf16.gmra.mrb[0].mxu0 %v398
      %v479 = vpop.f32.mrb[0].mxu0
      %v480 = vadd.f32 0.0, %v479
      %v481 = vpop.f32.mrb[0].mxu0
      %v482 = vadd.f32 0.0, %v481
      %v483 = vpop.f32.mrb[0].mxu0
      %v484 = vadd.f32 0.0, %v483
      %v485 = vpop.f32.mrb[0].mxu0
      %v486 = vadd.f32 0.0, %v485
      %487 = vmatprep.mubr.bf16.mxu0 0
      %488 = vmatmul.mubr.bf16.gmra.mrb[0].mxu0 %v401
      %v489 = vpop.f32.mrb[0].mxu0
      %v490 = vadd.f32 0.0, %v489
      %v491 = vpop.f32.mrb[0].mxu0
      %v492 = vadd.f32 0.0, %v491
      %v493 = vpop.f32.mrb[0].mxu0
      %v494 = vadd.f32 0.0, %v493
      %v495 = vpop.f32.mrb[0].mxu0
      %v496 = vadd.f32 0.0, %v495
      %497 = vmatprep.mubr.bf16.mxu0 0
      %498 = vmatmul.mubr.bf16.gmra.mrb[0].mxu0 %v404
      %v499 = vpop.f32.mrb[0].mxu0
      %v500 = vadd.f32 0.0, %v499
      %v501 = vpop.f32.mrb[0].mxu0
      %v502 = vadd.f32 0.0, %v501
      %v503 = vpop.f32.mrb[0].mxu0
      %v504 = vadd.f32 0.0, %v503
      %v505 = vpop.f32.mrb[0].mxu0
      %v506 = vadd.f32 0.0, %v505
      %507 = vmatprep.mubr.bf16.mxu0 0
      %508 = vmatmul.mubr.bf16.gmra.mrb[0].mxu0 %v407
      %v509 = vpop.f32.mrb[0].mxu0
      %v510 = vadd.f32 0.0, %v509
      %v511 = vpop.f32.mrb[0].mxu0
      %v512 = vadd.f32 0.0, %v511
      %v513 = vpop.f32.mrb[0].mxu0
      %v514 = vadd.f32 0.0, %v513
      %v515 = vpop.f32.mrb[0].mxu0
      %v516 = vadd.f32 0.0, %v515
      %517 = vmatprep.mubr.bf16.mxu0 0
      %518 = vmatmul.mubr.bf16.gmra.mrb[0].mxu0 %v410
      %v519 = vpop.f32.mrb[0].mxu0
      %v520 = vadd.f32 0.0, %v519
      %v521 = vpop.f32.mrb[0].mxu0
      %v522 = vadd.f32 0.0, %v521
      %v523 = vpop.f32.mrb[0].mxu0
      %v524 = vadd.f32 0.0, %v523
      %v525 = vpop.f32.mrb[0].mxu0
      %v526 = vadd.f32 0.0, %v525
      %527 = vmatprep.mubr.bf16.mxu0 0
      %528 = vmatmul.mubr.bf16.gmra.mrb[0].mxu0 %v413
      %v529 = vpop.f32.mrb[0].mxu0
      %v530 = vadd.f32 0.0, %v529
      %v531 = vpop.f32.mrb[0].mxu0
      %v532 = vadd.f32 0.0, %v531
      %v533 = vpop.f32.mrb[0].mxu0
      %v534 = vadd.f32 0.0, %v533
      %v535 = vpop.f32.mrb[0].mxu0
      %v536 = vadd.f32 0.0, %v535
      %537 = vmatprep.mubr.bf16.mxu0 0
      %538 = vmatmul.mubr.bf16.gmra.mrb[0].mxu0 %v416
      %v539 = vpop.f32.mrb[0].mxu0
      %v540 = vadd.f32 0.0, %v539
      %v541 = vpop.f32.mrb[0].mxu0
      %v542 = vadd.f32 0.0, %v541
      %v543 = vpop.f32.mrb[0].mxu0
      %v544 = vadd.f32 0.0, %v543
      %v545 = vpop.f32.mrb[0].mxu0
      %v546 = vadd.f32 0.0, %v545
      %547 = vmatprep.mubr.bf16.mxu0 0
      %548 = vmatmul.mubr.bf16.gmra.mrb[0].mxu0 %v419
      %v549 = vpop.f32.mrb[0].mxu0
      %v550 = vadd.f32 0.0, %v549
      %v551 = vpop.f32.mrb[0].mxu0
      %v552 = vadd.f32 0.0, %v551
      %v553 = vpop.f32.mrb[0].mxu0
      %v554 = vadd.f32 0.0, %v553
      %v555 = vpop.f32.mrb[0].mxu0
      %v556 = vadd.f32 0.0, %v555
      %557 = vmatprep.mubr.bf16.mxu0 0
      %558 = vmatmul.mubr.bf16.gmra.mrb[0].mxu0 %v422
      %v559 = vpop.f32.mrb[0].mxu0
      %v560 = vadd.f32 0.0, %v559
      %v561 = vpop.f32.mrb[0].mxu0
      %v562 = vadd.f32 0.0, %v561
      %v563 = vpop.f32.mrb[0].mxu0
      %v564 = vadd.f32 0.0, %v563
      %v565 = vpop.f32.mrb[0].mxu0
      %v566 = vadd.f32 0.0, %v565
      %567 = vmatprep.mubr.bf16.mxu0 0
      %568 = vmatmul.mubr.bf16.gmra.mrb[0].mxu0 %v425
      %v569 = vpop.f32.mrb[0].mxu0
      %v570 = vadd.f32 0.0, %v569
      %v571 = vpop.f32.mrb[0].mxu0
      %v572 = vadd.f32 0.0, %v571
      %v573 = vpop.f32.mrb[0].mxu0
      %v574 = vadd.f32 0.0, %v573
      %v575 = vpop.f32.mrb[0].mxu0
      %v576 = vadd.f32 0.0, %v575
      %577 = vmatprep.mubr.bf16.mxu0 0
      %578 = vmatmul.mubr.bf16.gmra.mrb[0].mxu0 %v428
      %v579 = vpop.f32.mrb[0].mxu0
      %v580 = vadd.f32 0.0, %v579
      %v581 = vpop.f32.mrb[0].mxu0
      %v582 = vadd.f32 0.0, %v581
      %v583 = vpop.f32.mrb[0].mxu0
      %v584 = vadd.f32 0.0, %v583
      %v585 = vpop.f32.mrb[0].mxu0
      %v586 = vadd.f32 0.0, %v585
      %587 = vmatprep.mubr.bf16.mxu0 0
      %588 = vmatmul.mubr.bf16.gmra.mrb[0].mxu0 %v431
      %v589 = vpop.f32.mrb[0].mxu0
      %v590 = vadd.f32 0.0, %v589
      %v591 = vpop.f32.mrb[0].mxu0
      %v592 = vadd.f32 0.0, %v591
      %v593 = vpop.f32.mrb[0].mxu0
      %v594 = vadd.f32 0.0, %v593
      %v595 = vpop.f32.mrb[0].mxu0
      %v596 = vadd.f32 0.0, %v595
      %597 = vmatprep.mubr.bf16.mxu0 0
      %598 = vmatmul.mubr.bf16.gmra.mrb[0].mxu0 %v434
      %v599 = vpop.f32.mrb[0].mxu0
      %v600 = vadd.f32 0.0, %v599
      %v601 = vpop.f32.mrb[0].mxu0
      %v602 = vadd.f32 0.0, %v601
      %v603 = vpop.f32.mrb[0].mxu0
      %v604 = vadd.f32 0.0, %v603
      %v605 = vpop.f32.mrb[0].mxu0
      %v606 = vadd.f32 0.0, %v605
      %607 = vmatprep.mubr.bf16.mxu0 0
      %608 = vmatmul.mubr.bf16.gmra.mrb[0].mxu0 %v437
      %v609 = vpop.f32.mrb[0].mxu0
      %v610 = vadd.f32 0.0, %v609
      %v611 = vpop.f32.mrb[0].mxu0
      %v612 = vadd.f32 0.0, %v611
      %v613 = vpop.f32.mrb[0].mxu0
      %v614 = vadd.f32 0.0, %v613
      %v615 = vpop.f32.mrb[0].mxu0
      %v616 = vadd.f32 0.0, %v615
      %617 = vmatprep.mubr.bf16.mxu0 0
      %618 = vmatmul.mubr.bf16.gmra.mrb[0].mxu0 %v440
      %v619 = vpop.f32.mrb[0].mxu0
      %v620 = vadd.f32 0.0, %v619
      %v621 = vpop.f32.mrb[0].mxu0
      %v622 = vadd.f32 0.0, %v621
      %v623 = vpop.f32.mrb[0].mxu0
      %v624 = vadd.f32 0.0, %v623
      %v625 = vpop.f32.mrb[0].mxu0
      %v626 = vadd.f32 0.0, %v625
      %627 = vmatprep.mubr.bf16.mxu0 0
      %628 = vmatmul.mubr.bf16.gmra.mrb[0].mxu0 %v443
      %v629 = vpop.f32.mrb[0].mxu0
      %v630 = vadd.f32 0.0, %v629
      %v631 = vpop.f32.mrb[0].mxu0
      %v632 = vadd.f32 0.0, %v631
      %v633 = vpop.f32.mrb[0].mxu0
      %v634 = vadd.f32 0.0, %v633
      %v635 = vpop.f32.mrb[0].mxu0
      %v636 = vadd.f32 0.0, %v635
      %637 = vdwg.mxu0
      %v638 = vld [vmem:[#allocation2] sm:$0x3]
      %v639 = vmax.f32 %v480, %v490
      %v640 = vmax.f32 %v484, %v494
      %v641 = vmax.f32 %v639, %v500
      %v642 = vmax.f32 %v640, %v504
      %v643 = vmax.f32 %v641, %v510
      %v644 = vmax.f32 %v642, %v514
      %v645 = vmax.f32 %v643, %v520
      %v646 = vmax.f32 %v644, %v524
      %v647 = vmax.f32 %v645, %v530
      %v648 = vmax.f32 %v646, %v534
      %v649 = vmax.f32 %v647, %v540
      %v650 = vmax.f32 %v648, %v544
      %v651 = vmax.f32 %v649, %v550
      %v652 = vmax.f32 %v650, %v554
      %v653 = vmax.f32 %v651, %v560
      %v654 = vmax.f32 %v652, %v564
      %v655 = vmax.f32 %v653, %v570
      %v656 = vmax.f32 %v654, %v574
      %v657 = vmax.f32 %v655, %v580
      %v658 = vmax.f32 %v656, %v584
      %v659 = vmax.f32 %v657, %v590
      %v660 = vmax.f32 %v658, %v594
      %v661 = vmax.f32 %v659, %v600
      %v662 = vmax.f32 %v660, %v604
      %v663 = vmax.f32 %v661, %v610
      %v664 = vmax.f32 %v662, %v614
      %v665 = vmax.f32 %v663, %v620
      %v666 = vmax.f32 %v664, %v624
      %v667 = vmax.f32 %v665, %v630
      %v668 = vmax.f32 %v666, %v634
      %v669 = vmax.f32 %v667, %v668
      %v670 = vrot.slane %v669, 4
      %v671 = vmax.f32 %v669, %v670
      %v672 = vrot.slane %v671, 2
      %v673 = vmax.f32 %v671, %v672
      %v674 = vrot.slane %v673, 1
      %v675 = vmax.f32 %v673, %v674
      %v676 = vmax.f32 %v482, %v492
      %v677 = vmax.f32 %v486, %v496
      %v678 = vmax.f32 %v676, %v502
      %v679 = vmax.f32 %v677, %v506
      %v680 = vmax.f32 %v678, %v512
      %v681 = vmax.f32 %v679, %v516
      %v682 = vmax.f32 %v680, %v522
      %v683 = vmax.f32 %v681, %v526
      %v684 = vmax.f32 %v682, %v532
      %v685 = vmax.f32 %v683, %v536
      %v686 = vmax.f32 %v684, %v542
      %v687 = vmax.f32 %v685, %v546
      %v688 = vmax.f32 %v686, %v552
      %v689 = vmax.f32 %v687, %v556
      %v690 = vmax.f32 %v688, %v562
      %v691 = vmax.f32 %v689, %v566
      %v692 = vmax.f32 %v690, %v572
      %v693 = vmax.f32 %v691, %v576
      %v694 = vmax.f32 %v692, %v582
      %v695 = vmax.f32 %v693, %v586
      %v696 = vmax.f32 %v694, %v592
      %v697 = vmax.f32 %v695, %v596
      %v698 = vmax.f32 %v696, %v602
      %v699 = vmax.f32 %v697, %v606
      %v700 = vmax.f32 %v698, %v612
      %v701 = vmax.f32 %v699, %v616
      %v702 = vmax.f32 %v700, %v622
      %v703 = vmax.f32 %v701, %v626
      %v704 = vmax.f32 %v702, %v632
      %v705 = vmax.f32 %v703, %v636
      %v706 = vmax.f32 %v704, %v705
      %v707 = vrot.slane %v706, 4
      %v708 = vmax.f32 %v706, %v707
      %v709 = vrot.slane %v708, 2
      %v710 = vmax.f32 %v708, %v709
      %v711 = vrot.slane %v710, 1
      %v712 = vmax.f32 %v710, %v711
      %v715 = vcombine.low %v675, %v712
      %v717 = vunpack.c.l.s4 1966171168
      %v718 = vunpack.c.0.s8 %v717
      %v719 = vlaneseq
      %v720 = vshrl.u32 %v719, 7
      %v721 = vsub.s32 %v718, %v720
      %v722 = vrot.slane %v715, %v721
      %v724 = vunpack.c.l.s4 1966171168
      %v725 = vunpack.c.0.s8 %v724
      %v726 = vlaneseq
      %v727 = vshrl.u32 %v726, 7
      %v728 = vsub.s32 %v725, %v727
      %v729 = vrot.slane %v722, %v728
      %v731 = vmax.f32 %v638, %v729
      %v732 = vsub.f32 %v638, %v731
      %v733 = vmul.f32 %v732, 1.442695
      %v734 = vpow.pop %v733
      %v736 = vlaneseq
      %v737 = vshrl.u32 %v736, 7
      %v738 = vsub.s32 0, %v737
      %v739 = vrot.slane %v731, %v738
      %v740 = vlaneseq
      %v741 = vshrl.u32 %v740, 7
      %v742 = vsub.s32 1, %v741
      %v743 = vrot.slane %v731, %v742
      %v746 = vsub.f32 %v480, %v739
      %v747 = vsub.f32 %v482, %v743
      %v748 = vsub.f32 %v484, %v739
      %v749 = vsub.f32 %v486, %v743
      %v750 = vsub.f32 %v490, %v739
      %v751 = vsub.f32 %v492, %v743
      %v752 = vsub.f32 %v494, %v739
      %v753 = vsub.f32 %v496, %v743
      %v754 = vsub.f32 %v500, %v739
      %v755 = vsub.f32 %v502, %v743
      %v756 = vsub.f32 %v504, %v739
      %v757 = vsub.f32 %v506, %v743
      %v758 = vsub.f32 %v510, %v739
      %v759 = vsub.f32 %v512, %v743
      %v760 = vsub.f32 %v514, %v739
      %v761 = vsub.f32 %v516, %v743
      %v762 = vsub.f32 %v520, %v739
      %v763 = vsub.f32 %v522, %v743
      %v764 = vsub.f32 %v524, %v739
      %v765 = vsub.f32 %v526, %v743
      %v766 = vsub.f32 %v530, %v739
      %v767 = vsub.f32 %v532, %v743
      %v768 = vsub.f32 %v534, %v739
      %v769 = vsub.f32 %v536, %v743
      %v770 = vsub.f32 %v540, %v739
      %v771 = vsub.f32 %v542, %v743
      %v772 = vsub.f32 %v544, %v739
      %v773 = vsub.f32 %v546, %v743
      %v774 = vsub.f32 %v550, %v739
      %v775 = vsub.f32 %v552, %v743
      %v776 = vsub.f32 %v554, %v739
      %v777 = vsub.f32 %v556, %v743
      %v778 = vsub.f32 %v560, %v739
      %v779 = vsub.f32 %v562, %v743
      %v780 = vsub.f32 %v564, %v739
      %v781 = vsub.f32 %v566, %v743
      %v782 = vsub.f32 %v570, %v739
      %v783 = vsub.f32 %v572, %v743
      %v784 = vsub.f32 %v574, %v739
      %v785 = vsub.f32 %v576, %v743
      %v786 = vsub.f32 %v580, %v739
      %v787 = vsub.f32 %v582, %v743
      %v788 = vsub.f32 %v584, %v739
      %v789 = vsub.f32 %v586, %v743
      %v790 = vsub.f32 %v590, %v739
      %v791 = vsub.f32 %v592, %v743
      %v792 = vsub.f32 %v594, %v739
      %v793 = vsub.f32 %v596, %v743
      %v794 = vsub.f32 %v600, %v739
      %v795 = vsub.f32 %v602, %v743
      %v796 = vsub.f32 %v604, %v739
      %v797 = vsub.f32 %v606, %v743
      %v798 = vsub.f32 %v610, %v739
      %v799 = vsub.f32 %v612, %v743
      %v800 = vsub.f32 %v614, %v739
      %v801 = vsub.f32 %v616, %v743
      %v802 = vsub.f32 %v620, %v739
      %v803 = vsub.f32 %v622, %v743
      %v804 = vsub.f32 %v624, %v739
      %v805 = vsub.f32 %v626, %v743
      %v806 = vsub.f32 %v630, %v739
      %v807 = vsub.f32 %v632, %v743
      %v808 = vsub.f32 %v634, %v739
      %v809 = vsub.f32 %v636, %v743
      %v810 = vmul.f32 %v746, 1.442695
      %v811 = vpow.pop %v810
      %v812 = vmul.f32 %v747, 1.442695
      %v813 = vpow.pop %v812
      %v814 = vmul.f32 %v748, 1.442695
      %v815 = vpow.pop %v814
      %v816 = vmul.f32 %v749, 1.442695
      %v817 = vpow.pop %v816
      %v818 = vmul.f32 %v750, 1.442695
      %v819 = vpow.pop %v818
      %v820 = vmul.f32 %v751, 1.442695
      %v821 = vpow.pop %v820
      %v822 = vmul.f32 %v752, 1.442695
      %v823 = vpow.pop %v822
      %v824 = vmul.f32 %v753, 1.442695
      %v825 = vpow.pop %v824
      %v826 = vmul.f32 %v754, 1.442695
      %v827 = vpow.pop %v826
      %v828 = vmul.f32 %v755, 1.442695
      %v829 = vpow.pop %v828
      %v830 = vmul.f32 %v756, 1.442695
      %v831 = vpow.pop %v830
      %v832 = vmul.f32 %v757, 1.442695
      %v833 = vpow.pop %v832
      %v834 = vmul.f32 %v758, 1.442695
      %v835 = vpow.pop %v834
      %v836 = vmul.f32 %v759, 1.442695
      %v837 = vpow.pop %v836
      %v838 = vmul.f32 %v760, 1.442695
      %v839 = vpow.pop %v838
      %v840 = vmul.f32 %v761, 1.442695
      %v841 = vpow.pop %v840
      %v842 = vmul.f32 %v762, 1.442695
      %v843 = vpow.pop %v842
      %v844 = vmul.f32 %v763, 1.442695
      %v845 = vpow.pop %v844
      %v846 = vmul.f32 %v764, 1.442695
      %v847 = vpow.pop %v846
      %v848 = vmul.f32 %v765, 1.442695
      %v849 = vpow.pop %v848
      %v850 = vmul.f32 %v766, 1.442695
      %v851 = vpow.pop %v850
      %v852 = vmul.f32 %v767, 1.442695
      %v853 = vpow.pop %v852
      %v854 = vmul.f32 %v768, 1.442695
      %v855 = vpow.pop %v854
      %v856 = vmul.f32 %v769, 1.442695
      %v857 = vpow.pop %v856
      %v858 = vmul.f32 %v770, 1.442695
      %v859 = vpow.pop %v858
      %v860 = vmul.f32 %v771, 1.442695
      %v861 = vpow.pop %v860
      %v862 = vmul.f32 %v772, 1.442695
      %v863 = vpow.pop %v862
      %v864 = vmul.f32 %v773, 1.442695
      %v865 = vpow.pop %v864
      %v866 = vmul.f32 %v774, 1.442695
      %v867 = vpow.pop %v866
      %v868 = vmul.f32 %v775, 1.442695
      %v869 = vpow.pop %v868
      %v870 = vmul.f32 %v776, 1.442695
      %v871 = vpow.pop %v870
      %v872 = vmul.f32 %v777, 1.442695
      %v873 = vpow.pop %v872
      %v874 = vmul.f32 %v778, 1.442695
      %v875 = vpow.pop %v874
      %v876 = vmul.f32 %v779, 1.442695
      %v877 = vpow.pop %v876
      %v878 = vmul.f32 %v780, 1.442695
      %v879 = vpow.pop %v878
      %v880 = vmul.f32 %v781, 1.442695
      %v881 = vpow.pop %v880
      %v882 = vmul.f32 %v782, 1.442695
      %v883 = vpow.pop %v882
      %v884 = vmul.f32 %v783, 1.442695
      %v885 = vpow.pop %v884
      %v886 = vmul.f32 %v784, 1.442695
      %v887 = vpow.pop %v886
      %v888 = vmul.f32 %v785, 1.442695
      %v889 = vpow.pop %v888
      %v890 = vmul.f32 %v786, 1.442695
      %v891 = vpow.pop %v890
      %v892 = vmul.f32 %v787, 1.442695
      %v893 = vpow.pop %v892
      %v894 = vmul.f32 %v788, 1.442695
      %v895 = vpow.pop %v894
      %v896 = vmul.f32 %v789, 1.442695
      %v897 = vpow.pop %v896
      %v898 = vmul.f32 %v790, 1.442695
      %v899 = vpow.pop %v898
      %v900 = vmul.f32 %v791, 1.442695
      %v901 = vpow.pop %v900
      %v902 = vmul.f32 %v792, 1.442695
      %v903 = vpow.pop %v902
      %v904 = vmul.f32 %v793, 1.442695
      %v905 = vpow.pop %v904
      %v906 = vmul.f32 %v794, 1.442695
      %v907 = vpow.pop %v906
      %v908 = vmul.f32 %v795, 1.442695
      %v909 = vpow.pop %v908
      %v910 = vmul.f32 %v796, 1.442695
      %v911 = vpow.pop %v910
      %v912 = vmul.f32 %v797, 1.442695
      %v913 = vpow.pop %v912
      %v914 = vmul.f32 %v798, 1.442695
      %v915 = vpow.pop %v914
      %v916 = vmul.f32 %v799, 1.442695
      %v917 = vpow.pop %v916
      %v918 = vmul.f32 %v800, 1.442695
      %v919 = vpow.pop %v918
      %v920 = vmul.f32 %v801, 1.442695
      %v921 = vpow.pop %v920
      %v922 = vmul.f32 %v802, 1.442695
      %v923 = vpow.pop %v922
      %v924 = vmul.f32 %v803, 1.442695
      %v925 = vpow.pop %v924
      %v926 = vmul.f32 %v804, 1.442695
      %v927 = vpow.pop %v926
      %v928 = vmul.f32 %v805, 1.442695
      %v929 = vpow.pop %v928
      %v930 = vmul.f32 %v806, 1.442695
      %v931 = vpow.pop %v930
      %v932 = vmul.f32 %v807, 1.442695
      %v933 = vpow.pop %v932
      %v934 = vmul.f32 %v808, 1.442695
      %v935 = vpow.pop %v934
      %v936 = vmul.f32 %v809, 1.442695
      %v937 = vpow.pop %v936
      %v938 = vld [vmem:[#allocation3] sm:$0x3]
      %v939 = vmul.f32 %v734, %v938
      %v940 = vadd.f32 %v811, %v815
      %v941 = vadd.f32 %v940, %v819
      %v942 = vadd.f32 %v941, %v823
      %v943 = vadd.f32 %v942, %v827
      %v944 = vadd.f32 %v943, %v831
      %v945 = vadd.f32 %v944, %v835
      %v946 = vadd.f32 %v945, %v839
      %v947 = vadd.f32 %v946, %v843
      %v948 = vadd.f32 %v947, %v847
      %v949 = vadd.f32 %v948, %v851
      %v950 = vadd.f32 %v949, %v855
      %v951 = vadd.f32 %v950, %v859
      %v952 = vadd.f32 %v951, %v863
      %v953 = vadd.f32 %v952, %v867
      %v954 = vadd.f32 %v953, %v871
      %v955 = vadd.f32 %v954, %v875
      %v956 = vadd.f32 %v955, %v879
      %v957 = vadd.f32 %v956, %v883
      %v958 = vadd.f32 %v957, %v887
      %v959 = vadd.f32 %v958, %v891
      %v960 = vadd.f32 %v959, %v895
      %v961 = vadd.f32 %v960, %v899
      %v962 = vadd.f32 %v961, %v903
      %v963 = vadd.f32 %v962, %v907
      %v964 = vadd.f32 %v963, %v911
      %v965 = vadd.f32 %v964, %v915
      %v966 = vadd.f32 %v965, %v919
      %v967 = vadd.f32 %v966, %v923
      %v968 = vadd.f32 %v967, %v927
      %v969 = vadd.f32 %v968, %v931
      %v970 = vadd.f32 %v969, %v935
      %v971 = vrot.slane %v970, 4
      %v972 = vadd.f32 %v970, %v971
      %v973 = vrot.slane %v972, 2
      %v974 = vadd.f32 %v972, %v973
      %v975 = vrot.slane %v974, 1
      %v976 = vadd.f32 %v974, %v975
      %v977 = vadd.f32 %v813, %v817
      %v978 = vadd.f32 %v977, %v821
      %v979 = vadd.f32 %v978, %v825
      %v980 = vadd.f32 %v979, %v829
      %v981 = vadd.f32 %v980, %v833
      %v982 = vadd.f32 %v981, %v837
      %v983 = vadd.f32 %v982, %v841
      %v984 = vadd.f32 %v983, %v845
      %v985 = vadd.f32 %v984, %v849
      %v986 = vadd.f32 %v985, %v853
      %v987 = vadd.f32 %v986, %v857
      %v988 = vadd.f32 %v987, %v861
      %v989 = vadd.f32 %v988, %v865
      %v990 = vadd.f32 %v989, %v869
      %v991 = vadd.f32 %v990, %v873
      %v992 = vadd.f32 %v991, %v877
      %v993 = vadd.f32 %v992, %v881
      %v994 = vadd.f32 %v993, %v885
      %v995 = vadd.f32 %v994, %v889
      %v996 = vadd.f32 %v995, %v893
      %v997 = vadd.f32 %v996, %v897
      %v998 = vadd.f32 %v997, %v901
      %v999 = vadd.f32 %v998, %v905
      %v1000 = vadd.f32 %v999, %v909
      %v1001 = vadd.f32 %v1000, %v913
      %v1002 = vadd.f32 %v1001, %v917
      %v1003 = vadd.f32 %v1002, %v921
      %v1004 = vadd.f32 %v1003, %v925
      %v1005 = vadd.f32 %v1004, %v929
      %v1006 = vadd.f32 %v1005, %v933
      %v1007 = vadd.f32 %v1006, %v937
      %v1008 = vrot.slane %v1007, 4
      %v1009 = vadd.f32 %v1007, %v1008
      %v1010 = vrot.slane %v1009, 2
      %v1011 = vadd.f32 %v1009, %v1010
      %v1012 = vrot.slane %v1011, 1
      %v1013 = vadd.f32 %v1011, %v1012
      %v1016 = vcombine.low %v976, %v1013
      %v1018 = vunpack.c.l.s4 1966171168
      %v1019 = vunpack.c.0.s8 %v1018
      %v1020 = vlaneseq
      %v1021 = vshrl.u32 %v1020, 7
      %v1022 = vsub.s32 %v1019, %v1021
      %v1023 = vrot.slane %v1016, %v1022
      %v1025 = vunpack.c.l.s4 1966171168
      %v1026 = vunpack.c.0.s8 %v1025
      %v1027 = vlaneseq
      %v1028 = vshrl.u32 %v1027, 7
      %v1029 = vsub.s32 %v1026, %v1028
      %v1030 = vrot.slane %v1023, %v1029
      %v1032 = vadd.f32 %v939, %v1030
      %v1033 = vlaneseq
      %vm1034 = vcmp.ge.s32.totalorder %v1033, 0
      %vm1035 = vcmp.lt.s32.totalorder %v1033, 256
      %vm1036 = vmand %vm1034, %vm1035
      %1037 = vst.msk [vmem:[#allocation3] sm:$0x3] %vm1036, %v1032
      %v1038 = vld [vmem:[#allocation4] sm:$0xff]
      %v1039 = vld [vmem:[#allocation4 + $0x8] sm:$0xff]
      %v1040 = vld [vmem:[#allocation4 + $0x10] sm:$0xff]
      %v1041 = vld [vmem:[#allocation4 + $0x18] sm:$0xff]
      %v1042 = vld [vmem:[#allocation4 + $0x20] sm:$0xff]
      %v1043 = vld [vmem:[#allocation4 + $0x28] sm:$0xff]
      %v1044 = vld [vmem:[#allocation4 + $0x30] sm:$0xff]
      %v1045 = vld [vmem:[#allocation4 + $0x38] sm:$0xff]
      %v1047 = vlaneseq
      %v1048 = vshrl.u32 %v1047, 7
      %v1049 = vsub.s32 0, %v1048
      %v1050 = vrot.slane %v734, %v1049
      %v1051 = vlaneseq
      %v1052 = vshrl.u32 %v1051, 7
      %v1053 = vsub.s32 1, %v1052
      %v1054 = vrot.slane %v734, %v1053
      %v1057 = vmul.f32 %v1050, %v1038
      %v1058 = vmul.f32 %v1054, %v1039
      %v1059 = vmul.f32 %v1050, %v1040
      %v1060 = vmul.f32 %v1054, %v1041
      %v1061 = vmul.f32 %v1050, %v1042
      %v1062 = vmul.f32 %v1054, %v1043
      %v1063 = vmul.f32 %v1050, %v1044
      %v1064 = vmul.f32 %v1054, %v1045
      %v1065 = vpack.c.bf16 %v815, %v811
      %v1066 = vpack.c.bf16 %v817, %v813
      %v1067 = vpack.c.bf16 %v823, %v819
      %v1068 = vpack.c.bf16 %v825, %v821
      %v1069 = vpack.c.bf16 %v831, %v827
      %v1070 = vpack.c.bf16 %v833, %v829
      %v1071 = vpack.c.bf16 %v839, %v835
      %v1072 = vpack.c.bf16 %v841, %v837
      %v1073 = vpack.c.bf16 %v847, %v843
      %v1074 = vpack.c.bf16 %v849, %v845
      %v1075 = vpack.c.bf16 %v855, %v851
      %v1076 = vpack.c.bf16 %v857, %v853
      %v1077 = vpack.c.bf16 %v863, %v859
      %v1078 = vpack.c.bf16 %v865, %v861
      %v1079 = vpack.c.bf16 %v871, %v867
      %v1080 = vpack.c.bf16 %v873, %v869
      %v1081 = vpack.c.bf16 %v879, %v875
      %v1082 = vpack.c.bf16 %v881, %v877
      %v1083 = vpack.c.bf16 %v887, %v883
      %v1084 = vpack.c.bf16 %v889, %v885
      %v1085 = vpack.c.bf16 %v895, %v891
      %v1086 = vpack.c.bf16 %v897, %v893
      %v1087 = vpack.c.bf16 %v903, %v899
      %v1088 = vpack.c.bf16 %v905, %v901
      %v1089 = vpack.c.bf16 %v911, %v907
      %v1090 = vpack.c.bf16 %v913, %v909
      %v1091 = vpack.c.bf16 %v919, %v915
      %v1092 = vpack.c.bf16 %v921, %v917
      %v1093 = vpack.c.bf16 %v927, %v923
      %v1094 = vpack.c.bf16 %v929, %v925
      %v1095 = vpack.c.bf16 %v935, %v931
      %v1096 = vpack.c.bf16 %v937, %v933
      %v1101 = vunpack.c.l.b16 %v338
      %v1102 = vunpack.c.h.b16 %v338
      %v1103 = vunpack.c.l.b16 %v339
      %v1104 = vunpack.c.h.b16 %v339
      %v1105 = vunpack.c.l.b16 %v340
      %v1106 = vunpack.c.h.b16 %v340
      %v1107 = vunpack.c.l.b16 %v341
      %v1108 = vunpack.c.h.b16 %v341
      %v1109 = vpack.c.b16 %v1103, %v1101
      %v1110 = vpack.c.b16 %v1104, %v1102
      %v1111 = vpack.c.b16 %v1107, %v1105
      %v1112 = vpack.c.b16 %v1108, %v1106
      %1117 = vmatprep.subr.bf16.mxu0 %v1066
      %1118 = vmatpush1.bf16.msra.mxu0 %v1065
      %1119 = vmatprep.subr.bf16.mxu0 %v1068
      %1120 = vmatpush1.bf16.msra.mxu0 %v1067
      %1121 = vmatprep.subr.bf16.mxu0 %v1070
      %1122 = vmatpush1.bf16.msra.mxu0 %v1069
      %1123 = vmatprep.subr.bf16.mxu0 %v1072
      %1124 = vmatpush1.bf16.msra.mxu0 %v1071
      %1125 = vmatprep.subr.bf16.mxu0 %v1074
      %1126 = vmatpush1.bf16.msra.mxu0 %v1073
      %1127 = vmatprep.subr.bf16.mxu0 %v1076
      %1128 = vmatpush1.bf16.msra.mxu0 %v1075
      %1129 = vmatprep.subr.bf16.mxu0 %v1078
      %1130 = vmatpush1.bf16.msra.mxu0 %v1077
      %1131 = vmatprep.subr.bf16.mxu0 %v1080
      %1132 = vmatpush1.bf16.msra.mxu0 %v1079
      %1133 = vmatprep.subr.bf16.mxu0 %v1082
      %1134 = vmatpush1.bf16.msra.mxu0 %v1081
      %1135 = vmatprep.subr.bf16.mxu0 %v1084
      %1136 = vmatpush1.bf16.msra.mxu0 %v1083
      %1137 = vmatprep.subr.bf16.mxu0 %v1086
      %1138 = vmatpush1.bf16.msra.mxu0 %v1085
      %1139 = vmatprep.subr.bf16.mxu0 %v1088
      %1140 = vmatpush1.bf16.msra.mxu0 %v1087
      %1141 = vmatprep.subr.bf16.mxu0 %v1090
      %1142 = vmatpush1.bf16.msra.mxu0 %v1089
      %1143 = vmatprep.subr.bf16.mxu0 %v1092
      %1144 = vmatpush1.bf16.msra.mxu0 %v1091
      %1145 = vmatprep.subr.bf16.mxu0 %v1094
      %1146 = vmatpush1.bf16.msra.mxu0 %v1093
      %1147 = vmatprep.subr.bf16.mxu0 %v1096
      %1148 = vmatpush1.bf16.msra.mxu0 %v1095
      %1149 = vmatprep.mubr.bf16.mxu0 %v1110
      %1150 = vmatmul.mubr.bf16.gmra.mrb[0].mxu0 %v1109
      %v1151 = vpop.f32.mrb[0].mxu0
      %v1152 = vadd.f32 0.0, %v1151
      %v1153 = vpop.f32.mrb[0].mxu0
      %v1154 = vadd.f32 0.0, %v1153
      %v1155 = vpop.f32.mrb[0].mxu0
      %v1156 = vadd.f32 0.0, %v1155
      %v1157 = vpop.f32.mrb[0].mxu0
      %v1158 = vadd.f32 0.0, %v1157
      %1159 = vmatprep.mubr.bf16.mxu0 %v1112
      %1160 = vmatmul.mubr.bf16.gmra.mrb[0].mxu0 %v1111
      %v1161 = vpop.f32.mrb[0].mxu0
      %v1162 = vadd.f32 0.0, %v1161
      %v1163 = vpop.f32.mrb[0].mxu0
      %v1164 = vadd.f32 0.0, %v1163
      %v1165 = vpop.f32.mrb[0].mxu0
      %v1166 = vadd.f32 0.0, %v1165
      %v1167 = vpop.f32.mrb[0].mxu0
      %v1168 = vadd.f32 0.0, %v1167
      %1169 = vdwg.mxu0
      %v1170 = vadd.f32 %v1057, %v1152
      %v1171 = vadd.f32 %v1058, %v1154
      %v1172 = vadd.f32 %v1059, %v1156
      %v1173 = vadd.f32 %v1060, %v1158
      %v1174 = vadd.f32 %v1061, %v1162
      %v1175 = vadd.f32 %v1062, %v1164
      %v1176 = vadd.f32 %v1063, %v1166
      %v1177 = vadd.f32 %v1064, %v1168
      %1178 = vst [vmem:[#allocation4] sm:$0xff] %v1170
      %1179 = vst [vmem:[#allocation4 + $0x8] sm:$0xff] %v1171
      %1180 = vst [vmem:[#allocation4 + $0x10] sm:$0xff] %v1172
      %1181 = vst [vmem:[#allocation4 + $0x18] sm:$0xff] %v1173
      %1182 = vst [vmem:[#allocation4 + $0x20] sm:$0xff] %v1174
      %1183 = vst [vmem:[#allocation4 + $0x28] sm:$0xff] %v1175
      %1184 = vst [vmem:[#allocation4 + $0x30] sm:$0xff] %v1176
      %1185 = vst [vmem:[#allocation4 + $0x38] sm:$0xff] %v1177
      %1186 = vst.msk [vmem:[#allocation2] sm:$0x3] %vm1036, %v731
      // Predicated region
      $region41: #{self_attention_pallas.3} parent=35 // pred_check
        %p1187 = pneg %p318
      $region42: #{self_attention_pallas.3} parent=35 // pred_check_branch
        %1189 = sbr.rel (%p1187) target = $region44
      $region43: #{self_attention_pallas.3} parent=35 // pred_region
        %v1190 = vld [vmem:[#allocation3] sm:$0x3]
        %v1191 = vrcp.pop %v1190
        %v1192 = vld [vmem:[#allocation4] sm:$0xff]
        %v1193 = vld [vmem:[#allocation4 + $0x8] sm:$0xff]
        %v1194 = vld [vmem:[#allocation4 + $0x10] sm:$0xff]
        %v1195 = vld [vmem:[#allocation4 + $0x18] sm:$0xff]
        %v1196 = vld [vmem:[#allocation4 + $0x20] sm:$0xff]
        %v1197 = vld [vmem:[#allocation4 + $0x28] sm:$0xff]
        %v1198 = vld [vmem:[#allocation4 + $0x30] sm:$0xff]
        %v1199 = vld [vmem:[#allocation4 + $0x38] sm:$0xff]
        %v1201 = vlaneseq
        %v1202 = vshrl.u32 %v1201, 7
        %v1203 = vsub.s32 0, %v1202
        %v1204 = vrot.slane %v1191, %v1203
        %v1205 = vlaneseq
        %v1206 = vshrl.u32 %v1205, 7
        %v1207 = vsub.s32 1, %v1206
        %v1208 = vrot.slane %v1191, %v1207
        %v1211 = vmul.f32 %v1192, %v1204
        %v1212 = vmul.f32 %v1193, %v1208
        %v1213 = vmul.f32 %v1194, %v1204
        %v1214 = vmul.f32 %v1195, %v1208
        %v1215 = vmul.f32 %v1196, %v1204
        %v1216 = vmul.f32 %v1197, %v1208
        %v1217 = vmul.f32 %v1198, %v1204
        %v1218 = vmul.f32 %v1199, %v1208
        %s1219 = sld [smem:[#allocation5]]
        %v1220 = vstv %s1219
        %v1221 = vmul.f32 %v1220, %v1211
        %v1222 = vmul.f32 %v1220, %v1212
        %v1223 = vmul.f32 %v1220, %v1213
        %v1224 = vmul.f32 %v1220, %v1214
        %v1225 = vmul.f32 %v1220, %v1215
        %v1226 = vmul.f32 %v1220, %v1216
        %v1227 = vmul.f32 %v1220, %v1217
        %v1228 = vmul.f32 %v1220, %v1218
        %v1229 = vld [vmem:[%s305] sm:$0xff]
        %v1230 = vld [vmem:[%s305 + $0x8] sm:$0xff]
        %v1231 = vld [vmem:[%s305 + $0x10] sm:$0xff]
        %v1232 = vld [vmem:[%s305 + $0x18] sm:$0xff]
        %v1233 = vld [vmem:[%s305 + $0x20] sm:$0xff]
        %v1234 = vld [vmem:[%s305 + $0x28] sm:$0xff]
        %v1235 = vld [vmem:[%s305 + $0x30] sm:$0xff]
        %v1236 = vld [vmem:[%s305 + $0x38] sm:$0xff]
        %v1237 = vadd.f32 %v1221, %v1229
        %v1238 = vadd.f32 %v1222, %v1230
        %v1239 = vadd.f32 %v1223, %v1231
        %v1240 = vadd.f32 %v1224, %v1232
        %v1241 = vadd.f32 %v1225, %v1233
        %v1242 = vadd.f32 %v1226, %v1234
        %v1243 = vadd.f32 %v1227, %v1235
        %v1244 = vadd.f32 %v1228, %v1236
        %1245 = vst [vmem:[%s315] sm:$0xff] %v1237
        %1246 = vst [vmem:[%s315 + $0x8] sm:$0xff] %v1238
        %1247 = vst [vmem:[%s315 + $0x10] sm:$0xff] %v1239
        %1248 = vst [vmem:[%s315 + $0x18] sm:$0xff] %v1240
        %1249 = vst [vmem:[%s315 + $0x20] sm:$0xff] %v1241
        %1250 = vst [vmem:[%s315 + $0x28] sm:$0xff] %v1242
        %1251 = vst [vmem:[%s315 + $0x30] sm:$0xff] %v1243
        %1252 = vst [vmem:[%s315 + $0x38] sm:$0xff] %v1244
      $region44: #{self_attention_pallas.3} parent=35 // pred_fallthru
        _
      %s1253 = smul.u32 2, %s22
      %p1254 = scmp.lt.s32.totalorder %s21, 1
      %s1255 = scalar_select %p1254, %s21, 1
      %p1256 = scmp.lt.s32.totalorder %s1253, 1
      %s1257 = scalar_select %p1256, %s1253, 1
      %s1258 = smul.addr %s1255, 8
      %s1259 = sadd.s32 %s1257, %s1258
      %s1260 = smul.addr %s1259, 8
      %s1261 = scalar_lea.vmem %s4, %s1260
      // Predicated region
      $region45: #{self_attention_pallas.3} parent=35 // pred_check
        %p1262 = pneg %p160
      $region46: #{self_attention_pallas.3} parent=35 // pred_check_branch
        %1264 = sbr.rel (%p1262) target = $region48
      $region47: #{self_attention_pallas.3} parent=35 // pred_region
        %s1265 = smul.u32 2, %s22
      $region48: #{self_attention_pallas.3} parent=35 // pred_fallthru
        _
    $region36: #{self_attention_pallas.3} parent=5 // pred_fallthru
      _
    %p1266 = scmp.le.s32.totalorder 2, %s11
    // Predicated region
    $region49: #{self_attention_pallas.3} parent=5 // pred_check
      %p1267 = pneg %p1266
    $region50: #{self_attention_pallas.3} parent=5 // pred_check_branch
      %1269 = sbr.rel (%p1267) target = $region52
    $region51: #{self_attention_pallas.3} parent=5 // pred_region
      %s1270 = ssub.s32 %s11, 2
      // Predicated region
      $region53: #{self_attention_pallas.3} parent=51 // pred_check
        %p1271 = pneg %p166
      $region54: #{self_attention_pallas.3} parent=51 // pred_check_branch
        %1273 = sbr.rel (%p1271) target = $region56
      $region55: #{self_attention_pallas.3} parent=51 // pred_region
        %s1274 = smul.u32 2, %s25
        %p1275 = scmp.lt.s32.totalorder %s24, 1
        %s1276 = scalar_select %p1275, %s24, 1
        %p1277 = scmp.lt.s32.totalorder %s1274, 1
        %s1278 = scalar_select %p1277, %s1274, 1
        %s1279 = smul.addr %s1276, 8
        %s1280 = sadd.s32 %s1278, %s1279
        %s1281 = smul.addr %s1280, 8
        %s1282 = scalar_lea.vmem %s4, %s1281
      $region56: #{self_attention_pallas.3} parent=51 // pred_fallthru
        _
    $region52: #{self_attention_pallas.3} parent=5 // pred_fallthru
      _
  $region6: #{self_attention_pallas.3} parent=0 // loop_footer
    %s15 = sadd.s32 1, %s11
  $region7: #{self_attention_pallas.3} parent=0 // loop_footer_branch
    %10 = sbr.rel target = $region3
  $region8: #{self_attention_pallas.3} parent=0 // loop_exit
    _

</llo_original>
